<compile_context>
chip_gen: v7x
topology: tpu7x:2x2x1
jax: 0.10.0
libtpu: 0.0.40
codegen_flags: <defaults>
</compile_context>

<pallas_src>
import math
import numpy as np
import jax
import jax.numpy as jnp
from jax.experimental import pallas as pl
from jax.experimental.pallas import tpu as pltpu

# TODO(synk): cfg.dilation is not provided in the prompt; using flat square
# structuring elements (3,3), (5,5), (7,7), (9,9) for kernel..kernel3.
DILATION_SHAPES = ((3, 3), (5, 5), (7, 7), (9, 9))


# ----------------------------- numpy helpers --------------------------------
def _reflect_idx(i, n):
    # PyTorch 'reflect' padding index (edge not repeated)
    if n == 1:
        return 0
    period = 2 * (n - 1)
    i = i % period
    return i if i < n else period - i


def _replicate_idx(i, n):
    return min(max(i, 0), n - 1)


def _row_filter_matrix(n, taps, mode):
    """M such that (M @ X)[i, :] == sum_d taps[d] * X[border(i + d - c), :]."""
    c = (len(taps) - 1) // 2
    M = np.zeros((n, n), np.float32)
    for i in range(n):
        for d, w in enumerate(taps):
            j = i + d - c
            j = _reflect_idx(j, n) if mode == "reflect" else _replicate_idx(j, n)
            M[i, j] += float(w)
    return M


def _gaussian_taps(ksize=5, sigma=1.0):
    x = np.arange(ksize, dtype=np.float64) - ksize // 2
    g = np.exp(-(x ** 2) / (2.0 * sigma ** 2))
    return (g / g.sum()).astype(np.float32)


# ------------------------------- Pallas kernel ------------------------------
def _make_kernel(H, W, B, BW, ROW0, COL0, PAD, deltas):
    TAN22_5 = math.tan(math.radians(22.5))
    # Neighbour offsets (di, dj) for direction index k = 0..7
    # (matches kornia get_canny_nms_kernel ordering).
    NMS_OFFSETS = ((0, 1), (1, 1), (1, 0), (1, -1),
                   (0, -1), (-1, -1), (-1, 0), (-1, 1))

    def mm(a, b):
        # default precision (HIGHEST forced a multi-pass f32 decomposition)
        return jnp.dot(a, b, preferred_element_type=jnp.float32)

    def kernel(x_ref, ax_ref, bx_ref, ay_ref, by_ref, out_ref, pad_ref):
        # --- zero ONLY the PAD-wide halo strips around the image slab.  The
        # centre is always overwritten by set_center() before any shifted read.
        # Kept per grid step so it stays correct when the batch axis is split
        # across TensorCores (each core re-zeros its own scratch). ---
        pad_ref[ROW0 - PAD:ROW0, COL0 - PAD:COL0 + BW + PAD] = (
            jnp.zeros((PAD, BW + 2 * PAD), jnp.float32))
        pad_ref[ROW0 + H:ROW0 + H + PAD, COL0 - PAD:COL0 + BW + PAD] = (
            jnp.zeros((PAD, BW + 2 * PAD), jnp.float32))
        pad_ref[ROW0:ROW0 + H, COL0 - PAD:COL0] = (
            jnp.zeros((H, PAD), jnp.float32))
        pad_ref[ROW0:ROW0 + H, COL0 + BW:COL0 + BW + PAD] = (
            jnp.zeros((H, PAD), jnp.float32))

        # --- seam masks: a column whose (col + dj) source lies in a different
        # packed image must read zero (matches kornia zero / geodesic pad). ---
        col_in_img = None
        if B > 1:
            col_in_img = jax.lax.broadcasted_iota(jnp.int32, (H, BW), 1) % W
        seam_cache = {}

        def seam_mask(dj):
            m = seam_cache.get(dj)
            if m is None:
                m = (col_in_img < (W - dj)) if dj > 0 else (col_in_img >= (-dj))
                seam_cache[dj] = m
            return m

        def set_center(a):
            pad_ref[ROW0:ROW0 + H, COL0:COL0 + BW] = a

        def shifted(di, dj):
            # a[i + di, j + dj] with zero fill outside each packed image
            v = pad_ref[ROW0 + di:ROW0 + di + H, COL0 + dj:COL0 + dj + BW]
            if dj != 0 and B > 1:
                v = jnp.where(seam_mask(dj), v, 0.0)
            return v

        # --- bgr_to_rgb + rgb_to_grayscale (kornia weights); note the torch
        # module's RandomChannelShuffle is NOT in-place, so canny runs on the
        # un-shuffled input (matching the reference). ---
        b = x_ref[0, 0]
        g = x_ref[0, 1]
        r = x_ref[0, 2]
        gray = 0.299 * r + 0.587 * g + 0.114 * b          # (H, BW)

        # --- gaussian_blur2d(5x5, sigma=1, reflect) fused with sobel 3x3
        #     (replicate pad) as boundary-aware separable operators.  Column
        #     operators are block-diagonal so packed images never mix. ---
        gx = mm(mm(ax_ref[...], gray), bx_ref[...])
        gy = mm(mm(ay_ref[...], gray), by_ref[...])

        mag = jnp.sqrt(gx * gx + gy * gy + 1e-6)

        # --- 8-sector direction masks built directly from sign / slope
        #     comparisons (== round(atan2(gy,gx)/45) % 8 up to exact
        #     22.5-degree ties; avoids atan2 and 16 integer compares). ---
        abs_x = jnp.abs(gx)
        abs_y = jnp.abs(gy)
        gx_pos = gx >= 0.0
        gy_pos = gy >= 0.0
        horiz = abs_y <= TAN22_5 * abs_x
        vert = jnp.logical_and(jnp.logical_not(horiz), abs_x <= TAN22_5 * abs_y)
        diag = jnp.logical_not(jnp.logical_or(horiz, vert))
        masks = (
            jnp.logical_and(horiz, gx_pos),                                   # 0 E
            jnp.logical_and(diag, jnp.logical_and(gx_pos, gy_pos)),           # 1 SE
            jnp.logical_and(vert, gy_pos),                                    # 2 S
            jnp.logical_and(diag, jnp.logical_and(~gx_pos, gy_pos)),          # 3 SW
            jnp.logical_and(horiz, ~gx_pos),                                  # 4 W
            jnp.logical_and(diag, jnp.logical_and(~gx_pos, ~gy_pos)),         # 5 NW
            jnp.logical_and(vert, ~gy_pos),                                   # 6 N
            jnp.logical_and(diag, jnp.logical_and(gx_pos, ~gy_pos)),          # 7 NE
        )

        # --- non-maximum suppression ---
        set_center(mag)
        pos_val = jnp.zeros_like(mag)
        neg_val = jnp.zeros_like(mag)
        for k, (di, dj) in enumerate(NMS_OFFSETS):
            diff = mag - shifted(di, dj)
            pos_val = jnp.where(masks[k], diff, pos_val)
            neg_val = jnp.where(masks[(k + 4) & 7], diff, neg_val)
        is_max = jnp.minimum(pos_val, neg_val) > 0.0
        mag_nms = jnp.where(is_max, mag, 0.0)
        out_ref[0, 0] = mag_nms

        # --- incremental morphological dilation with flat SEs:
        # square(s_k) = square(delta_k) (+) square(s_{k-1}); each level is a
        # small separable row-max then col-max window.  Values >= 0 and the
        # window always contains the centre, so zero halo / seam-mask fill is
        # equivalent to kornia's geodesic (-1e4) border. ---
        cur = mag_nms
        for lvl, (dh, dw) in enumerate(deltas):
            rh, rw = dh // 2, dw // 2
            rowmax = cur
            if rh > 0:
                set_center(cur)
                for di in range(-rh, rh + 1):
                    if di != 0:
                        rowmax = jnp.maximum(rowmax, shifted(di, 0))
            full = rowmax
            if rw > 0:
                set_center(rowmax)
                for dj in range(-rw, rw + 1):
                    if dj != 0:
                        full = jnp.maximum(full, shifted(0, dj))
            out_ref[0, 1 + lvl] = full
            cur = full

    return kernel


# ------------------------------- wrapper -------------------------------------
def canny_edge_forward(x, dil_shapes=DILATION_SHAPES, chan_perm=None):
    N, C, H, W = x.shape
    assert C == 3, "expects 3-channel (BGR) images"
    assert len(dil_shapes) == 4, "module defines exactly 4 dilation kernels"
    x = x.astype(jnp.float32)

    # --- RandomChannelShuffle(p=0.75), done in the wrapper (pure permutation,
    # no reuse of kernel-resident data).  kornia's shuffle is not in-place, so
    # the canny path below correctly uses the UN-shuffled input. ---
    # TODO(synk): torch module shuffles channels randomly per-sample with
    # p=0.75; a fixed deterministic permutation (seed 0) is applied here.
    if chan_perm is None:
        chan_perm = tuple(int(i) for i in np.random.RandomState(0).permutation(3))
    x_shuffled = x[:, list(chan_perm), :, :]

    # --- lane-dense packing: ceil(128/W) images side-by-side on the last axis
    # so every kernel load/store is >=128 lanes wide. ---
    B = (-(-128 // W)) if W < 128 else 1
    BW = B * W
    N_pad = -(-N // B) * B
    NB = N_pad // B
    x_in = x if N_pad == N else jnp.concatenate(
        [x, jnp.zeros((N_pad - N, C, H, W), jnp.float32)], axis=0)
    x_packed = (x_in.reshape(NB, B, C, H, W)
                    .transpose(0, 2, 3, 1, 4)
                    .reshape(NB, C, H, BW))

    # boundary-aware separable blur+sobel operators (built once in numpy)
    g5 = _gaussian_taps(5, 1.0)
    smooth = np.array([1.0, 2.0, 1.0], np.float32)
    deriv = np.array([-1.0, 0.0, 1.0], np.float32)

    Mg_r = _row_filter_matrix(H, g5, "reflect")
    Ms_r = _row_filter_matrix(H, smooth, "replicate")
    Md_r = _row_filter_matrix(H, deriv, "replicate")
    Mg_c = _row_filter_matrix(W, g5, "reflect")
    Ms_c = _row_filter_matrix(W, smooth, "replicate")
    Md_c = _row_filter_matrix(W, deriv, "replicate")

    ax = (Ms_r @ Mg_r).astype(np.float32)          # rows: blur then [1,2,1]
    ay = (Md_r @ Mg_r).astype(np.float32)          # rows: blur then [-1,0,1]
    bxW = (Mg_c.T @ Md_c.T).astype(np.float32)     # cols: blur then [-1,0,1]
    byW = (Mg_c.T @ Ms_c.T).astype(np.float32)     # cols: blur then [1,2,1]
    eyeB = np.eye(B, dtype=np.float32)
    bx = np.kron(eyeB, bxW)                         # block-diag (BW, BW)
    by = np.kron(eyeB, byW)

    # incremental dilation deltas: square(s_k) = square(delta_k) (+) square(s_{k-1})
    deltas = []
    prev = (1, 1)
    for (kh, kw) in dil_shapes:
        assert kh % 2 == 1 and kw % 2 == 1, "odd structuring elements expected"
        assert kh >= prev[0] and kw >= prev[1], "non-decreasing SE sizes expected"
        deltas.append((kh - prev[0] + 1, kw - prev[1] + 1))
        prev = (kh, kw)

    PAD = max([1] + [max(dh // 2, dw // 2) for dh, dw in deltas])
    ROW0 = -(-PAD // 8) * 8          # tile-aligned image origin in scratch
    COL0 = -(-PAD // 128) * 128
    pad_rows = ROW0 + H + PAD
    pad_cols = COL0 + BW + PAD

    kernel = _make_kernel(H, W, B, BW, ROW0, COL0, PAD, tuple(deltas))

    # rough VMEM budget (double-buffered in/out, operators, padded scratch);
    # explicit so the scoped limit is well defined on v7x's 64 MiB VMEM.
    est = 4 * (2 * (3 * H * BW) + 2 * (5 * H * BW)
               + 2 * (2 * H * H + 2 * BW * BW)
               + (-(-pad_rows // 8) * 8) * (-(-pad_cols // 128) * 128))
    vmem_limit = int(min(max(2 * est, 32 * 2 ** 20), 96 * 2 ** 20))

    batch_map4 = lambda n: (n, 0, 0, 0)
    const_map2 = lambda n: (0, 0)

    out = pl.pallas_call(
        kernel,
        out_shape=jax.ShapeDtypeStruct((NB, 5, H, BW), jnp.float32),
        grid=(NB,),
        in_specs=[
            pl.BlockSpec((1, 3, H, BW), batch_map4),
            pl.BlockSpec((H, H), const_map2),
            pl.BlockSpec((BW, BW), const_map2),
            pl.BlockSpec((H, H), const_map2),
            pl.BlockSpec((BW, BW), const_map2),
        ],
        out_specs=pl.BlockSpec((1, 5, H, BW), batch_map4),
        scratch_shapes=[pltpu.VMEM((pad_rows, pad_cols), jnp.float32)],
        compiler_params=pltpu.CompilerParams(
            dimension_semantics=("parallel",),
            vmem_limit_bytes=vmem_limit),
    )(x_packed, jnp.asarray(ax), jnp.asarray(bx), jnp.asarray(ay), jnp.asarray(by))

    # unpack the lane-dense slab: (NB,5,H,BW) -> (N,5,H,W)
    out5 = (out.reshape(NB, 5, H, B, W)
               .transpose(0, 3, 1, 2, 4)
               .reshape(N_pad, 5, H, W)[:N])
    mag = out5[:, 0:1]
    d1 = out5[:, 1:2]
    d2 = out5[:, 2:3]
    d3 = out5[:, 3:4]
    d4 = out5[:, 4:5]
    return (mag, d1, d2, d3, d4, x_shuffled)


if __name__ == "__main__":
    key = jax.random.PRNGKey(0)
    N, C, H, W = 2, 3, 16, 16
    x = jax.random.uniform(key, (N, C, H, W), dtype=jnp.float32)

    outs = canny_edge_forward(x)
    outs = jax.block_until_ready(outs)

    assert len(outs) == 6
    assert outs[0].shape == (N, 1, H, W)        # canny magnitude (x_out[0])
    for o in outs[1:5]:
        assert o.shape == (N, 1, H, W)          # dilations
    assert outs[5].shape == (N, C, H, W)        # channel-shuffled input
    assert all(bool(jnp.all(jnp.isfinite(o))) for o in outs)

    # dilation self-checks: each dilation dominates its input (windows include
    # the centre) and dilations are monotone in SE size.
    assert bool(jnp.all(outs[1] >= outs[0]))
    assert bool(jnp.all(outs[2] >= outs[1]))
    assert bool(jnp.all(outs[3] >= outs[2]))
    assert bool(jnp.all(outs[4] >= outs[3]))

    print("KERNEL_OK")
</pallas_src>

<mosaic_0001>
module attributes {stable_mosaic.version = 11 : i64} {
  func.func @kernel(%arg0: i32, %arg1: memref<1x3x16x128xf32, #tpu.memory_space<vmem>>, %arg2: memref<16x16xf32, #tpu.memory_space<vmem>>, %arg3: memref<128x128xf32, #tpu.memory_space<vmem>>, %arg4: memref<16x16xf32, #tpu.memory_space<vmem>>, %arg5: memref<128x128xf32, #tpu.memory_space<vmem>>, %arg6: memref<1x5x16x128xf32, #tpu.memory_space<vmem>>, %arg7: memref<25x257xf32, #tpu.memory_space<vmem>>) attributes {dimension_semantics = [#tpu.dimension_semantics<parallel>], iteration_bounds = array<i64: 1>, scalar_prefetch = 0 : i64, scratch_operands = 1 : i64, tpu.core_type = #tpu.core_type<tc>, window_params = [{transform_indices = @transform_0, window_bounds = array<i64: 1, 3, 16, 128>}, {pipeline_mode = #tpu.pipeline_mode<synchronous>, transform_indices = @transform_1, window_bounds = array<i64: 16, 16>}, {pipeline_mode = #tpu.pipeline_mode<synchronous>, transform_indices = @transform_2, window_bounds = array<i64: 128, 128>}, {pipeline_mode = #tpu.pipeline_mode<synchronous>, transform_indices = @transform_3, window_bounds = array<i64: 16, 16>}, {pipeline_mode = #tpu.pipeline_mode<synchronous>, transform_indices = @transform_4, window_bounds = array<i64: 128, 128>}, {transform_indices = @transform_5, window_bounds = array<i64: 1, 5, 16, 128>}]} {
    %cst = arith.constant 0.000000e+00 : f32
    %0 = vector.broadcast %cst : f32 to vector<1x130xf32>
    %c7 = arith.constant 7 : index
    %c127 = arith.constant 127 : index
    %1 = vector.load %arg7[%c7, %c127] : memref<25x257xf32, #tpu.memory_space<vmem>>, vector<1x130xf32>
    tpu.vector_store %arg7[%c7, %c127], %0 {strides = array<i32>} : memref<25x257xf32, #tpu.memory_space<vmem>>, vector<1x130xf32>,
    %cst_0 = arith.constant 0.000000e+00 : f32
    %2 = vector.broadcast %cst_0 : f32 to vector<1x130xf32>
    %c24 = arith.constant 24 : index
    %c127_1 = arith.constant 127 : index
    %3 = vector.load %arg7[%c24, %c127_1] : memref<25x257xf32, #tpu.memory_space<vmem>>, vector<1x130xf32>
    tpu.vector_store %arg7[%c24, %c127_1], %2 {strides = array<i32>} : memref<25x257xf32, #tpu.memory_space<vmem>>, vector<1x130xf32>,
    %cst_2 = arith.constant 0.000000e+00 : f32
    %4 = vector.broadcast %cst_2 : f32 to vector<16x1xf32>
    %c8 = arith.constant 8 : index
    %c127_3 = arith.constant 127 : index
    %5 = vector.load %arg7[%c8, %c127_3] : memref<25x257xf32, #tpu.memory_space<vmem>>, vector<16x1xf32>
    tpu.vector_store %arg7[%c8, %c127_3], %4 {strides = array<i32>} : memref<25x257xf32, #tpu.memory_space<vmem>>, vector<16x1xf32>,
    %cst_4 = arith.constant 0.000000e+00 : f32
    %6 = vector.broadcast %cst_4 : f32 to vector<16x1xf32>
    %c8_5 = arith.constant 8 : index
    %c256 = arith.constant 256 : index
    %7 = vector.load %arg7[%c8_5, %c256] : memref<25x257xf32, #tpu.memory_space<vmem>>, vector<16x1xf32>
    tpu.vector_store %arg7[%c8_5, %c256], %6 {strides = array<i32>} : memref<25x257xf32, #tpu.memory_space<vmem>>, vector<16x1xf32>,
    %8 = tpu.iota {dimensions = array<i32: 1>} : vector<16x128xi32>
    %c16_i32 = arith.constant 16 : i32
    %c0_i32 = arith.constant 0 : i32
    %9 = arith.cmpi eq, %c16_i32, %c0_i32 : i32
    %c1_i32 = arith.constant 1 : i32
    %10 = arith.select %9, %c1_i32, %c16_i32 : i32
    %11 = vector.broadcast %10 : i32 to vector<16x128xi32>
    %12 = arith.remsi %8, %11 : vector<16x128xi32>
    %c0_i32_6 = arith.constant 0 : i32
    %13 = vector.broadcast %c0_i32_6 : i32 to vector<16x128xi32>
    %14 = arith.cmpi ne, %12, %13 : vector<16x128xi32>
    %c0_i32_7 = arith.constant 0 : i32
    %15 = vector.broadcast %c0_i32_7 : i32 to vector<16x128xi32>
    %16 = arith.cmpi slt, %12, %15 : vector<16x128xi32>
    %c0_i32_8 = arith.constant 0 : i32
    %17 = arith.cmpi slt, %10, %c0_i32_8 : i32
    %18 = vector.broadcast %17 : i1 to vector<16x128xi1>
    %19 = vector.broadcast %18 : vector<16x128xi1> to vector<16x128xi1>
    %20 = arith.xori %16, %19 : vector<16x128xi1>
    %21 = arith.andi %20, %14 : vector<16x128xi1>
    %22 = vector.broadcast %10 : i32 to vector<16x128xi32>
    %23 = arith.addi %12, %22 : vector<16x128xi32>
    %24 = arith.select %21, %23, %12 : vector<16x128xi1>, vector<16x128xi32>
    %c0 = arith.constant 0 : index
    %c0_9 = arith.constant 0 : index
    %c0_10 = arith.constant 0 : index
    %c0_11 = arith.constant 0 : index
    %25 = vector.load %arg1[%c0, %c0_9, %c0_10, %c0_11] : memref<1x3x16x128xf32, #tpu.memory_space<vmem>>, vector<1x1x16x128xf32>
    %26 = vector.shape_cast %25 : vector<1x1x16x128xf32> to vector<16x128xf32>
    %c0_12 = arith.constant 0 : index
    %c1 = arith.constant 1 : index
    %c0_13 = arith.constant 0 : index
    %c0_14 = arith.constant 0 : index
    %27 = vector.load %arg1[%c0_12, %c1, %c0_13, %c0_14] : memref<1x3x16x128xf32, #tpu.memory_space<vmem>>, vector<1x1x16x128xf32>
    %28 = vector.shape_cast %27 : vector<1x1x16x128xf32> to vector<16x128xf32>
    %c0_15 = arith.constant 0 : index
    %c2 = arith.constant 2 : index
    %c0_16 = arith.constant 0 : index
    %c0_17 = arith.constant 0 : index
    %29 = vector.load %arg1[%c0_15, %c2, %c0_16, %c0_17] : memref<1x3x16x128xf32, #tpu.memory_space<vmem>>, vector<1x1x16x128xf32>
    %30 = vector.shape_cast %29 : vector<1x1x16x128xf32> to vector<16x128xf32>
    %cst_18 = arith.constant 2.990000e-01 : f32
    %31 = vector.broadcast %cst_18 : f32 to vector<16x128xf32>
    %32 = arith.mulf %31, %30 : vector<16x128xf32>
    %cst_19 = arith.constant 5.870000e-01 : f32
    %33 = vector.broadcast %cst_19 : f32 to vector<16x128xf32>
    %34 = arith.mulf %33, %28 : vector<16x128xf32>
    %35 = arith.addf %32, %34 : vector<16x128xf32>
    %cst_20 = arith.constant 1.140000e-01 : f32
    %36 = vector.broadcast %cst_20 : f32 to vector<16x128xf32>
    %37 = arith.mulf %36, %26 : vector<16x128xf32>
    %38 = arith.addf %35, %37 : vector<16x128xf32>
    %c0_21 = arith.constant 0 : index
    %c0_22 = arith.constant 0 : index
    %39 = vector.load %arg2[%c0_21, %c0_22] : memref<16x16xf32, #tpu.memory_space<vmem>>, vector<16x16xf32>
    %cst_23 = arith.constant dense<0.000000e+00> : vector<16x128xf32>
    %40 = tpu.matmul %39, %38, %cst_23 {dimension_numbers = #tpu.dot_dimension_numbers<[1], [0], [0], [1], [0, 0, 1, 1], [], []>} : vector<16x16xf32>, vector<16x128xf32>, vector<16x128xf32> -> vector<16x128xf32>
    %c0_24 = arith.constant 0 : index
    %c0_25 = arith.constant 0 : index
    %41 = vector.load %arg3[%c0_24, %c0_25] : memref<128x128xf32, #tpu.memory_space<vmem>>, vector<128x128xf32>
    %cst_26 = arith.constant dense<0.000000e+00> : vector<16x128xf32>
    %42 = tpu.matmul %40, %41, %cst_26 {dimension_numbers = #tpu.dot_dimension_numbers<[1], [0], [0], [1], [0, 0, 1, 1], [], []>} : vector<16x128xf32>, vector<128x128xf32>, vector<16x128xf32> -> vector<16x128xf32>
    %c0_27 = arith.constant 0 : index
    %c0_28 = arith.constant 0 : index
    %43 = vector.load %arg4[%c0_27, %c0_28] : memref<16x16xf32, #tpu.memory_space<vmem>>, vector<16x16xf32>
    %cst_29 = arith.constant dense<0.000000e+00> : vector<16x128xf32>
    %44 = tpu.matmul %43, %38, %cst_29 {dimension_numbers = #tpu.dot_dimension_numbers<[1], [0], [0], [1], [0, 0, 1, 1], [], []>} : vector<16x16xf32>, vector<16x128xf32>, vector<16x128xf32> -> vector<16x128xf32>
    %c0_30 = arith.constant 0 : index
    %c0_31 = arith.constant 0 : index
    %45 = vector.load %arg5[%c0_30, %c0_31] : memref<128x128xf32, #tpu.memory_space<vmem>>, vector<128x128xf32>
    %cst_32 = arith.constant dense<0.000000e+00> : vector<16x128xf32>
    %46 = tpu.matmul %44, %45, %cst_32 {dimension_numbers = #tpu.dot_dimension_numbers<[1], [0], [0], [1], [0, 0, 1, 1], [], []>} : vector<16x128xf32>, vector<128x128xf32>, vector<16x128xf32> -> vector<16x128xf32>
    %47 = arith.mulf %42, %42 : vector<16x128xf32>
    %48 = arith.mulf %46, %46 : vector<16x128xf32>
    %49 = arith.addf %47, %48 : vector<16x128xf32>
    %cst_33 = arith.constant 9.99999997E-7 : f32
    %50 = vector.broadcast %cst_33 : f32 to vector<16x128xf32>
    %51 = arith.addf %49, %50 : vector<16x128xf32>
    %52 = math.sqrt %51 : vector<16x128xf32>
    %53 = math.absf %42 : vector<16x128xf32>
    %54 = math.absf %46 : vector<16x128xf32>
    %cst_34 = arith.constant 0.000000e+00 : f32
    %55 = vector.broadcast %cst_34 : f32 to vector<16x128xf32>
    %56 = arith.cmpf oge, %42, %55 : vector<16x128xf32>
    %cst_35 = arith.constant 0.000000e+00 : f32
    %57 = vector.broadcast %cst_35 : f32 to vector<16x128xf32>
    %58 = arith.cmpf oge, %46, %57 : vector<16x128xf32>
    %cst_36 = arith.constant 0.414213568 : f32
    %59 = vector.broadcast %cst_36 : f32 to vector<16x128xf32>
    %60 = arith.mulf %59, %53 : vector<16x128xf32>
    %61 = arith.cmpf ole, %54, %60 : vector<16x128xf32>
    %cst_37 = arith.constant dense<true> : vector<16x128xi1>
    %62 = arith.xori %61, %cst_37 : vector<16x128xi1>
    %cst_38 = arith.constant 0.414213568 : f32
    %63 = vector.broadcast %cst_38 : f32 to vector<16x128xf32>
    %64 = arith.mulf %63, %54 : vector<16x128xf32>
    %65 = arith.cmpf ole, %53, %64 : vector<16x128xf32>
    %66 = arith.andi %62, %65 : vector<16x128xi1>
    %67 = arith.ori %61, %66 : vector<16x128xi1>
    %cst_39 = arith.constant dense<true> : vector<16x128xi1>
    %68 = arith.xori %67, %cst_39 : vector<16x128xi1>
    %69 = arith.andi %61, %56 : vector<16x128xi1>
    %70 = arith.andi %56, %58 : vector<16x128xi1>
    %71 = arith.andi %68, %70 : vector<16x128xi1>
    %72 = arith.andi %66, %58 : vector<16x128xi1>
    %cst_40 = arith.constant dense<true> : vector<16x128xi1>
    %73 = arith.xori %56, %cst_40 : vector<16x128xi1>
    %74 = arith.andi %73, %58 : vector<16x128xi1>
    %75 = arith.andi %68, %74 : vector<16x128xi1>
    %cst_41 = arith.constant dense<true> : vector<16x128xi1>
    %76 = arith.xori %56, %cst_41 : vector<16x128xi1>
    %77 = arith.andi %61, %76 : vector<16x128xi1>
    %cst_42 = arith.constant dense<true> : vector<16x128xi1>
    %78 = arith.xori %56, %cst_42 : vector<16x128xi1>
    %cst_43 = arith.constant dense<true> : vector<16x128xi1>
    %79 = arith.xori %58, %cst_43 : vector<16x128xi1>
    %80 = arith.andi %78, %79 : vector<16x128xi1>
    %81 = arith.andi %68, %80 : vector<16x128xi1>
    %cst_44 = arith.constant dense<true> : vector<16x128xi1>
    %82 = arith.xori %58, %cst_44 : vector<16x128xi1>
    %83 = arith.andi %66, %82 : vector<16x128xi1>
    %cst_45 = arith.constant dense<true> : vector<16x128xi1>
    %84 = arith.xori %58, %cst_45 : vector<16x128xi1>
    %85 = arith.andi %56, %84 : vector<16x128xi1>
    %86 = arith.andi %68, %85 : vector<16x128xi1>
    %c8_46 = arith.constant 8 : index
    %c128 = arith.constant 128 : index
    %87 = vector.load %arg7[%c8_46, %c128] : memref<25x257xf32, #tpu.memory_space<vmem>>, vector<16x128xf32>
    tpu.vector_store %arg7[%c8_46, %c128], %52 {strides = array<i32>} : memref<25x257xf32, #tpu.memory_space<vmem>>, vector<16x128xf32>,
    %cst_47 = arith.constant 0.000000e+00 : f32
    %88 = vector.broadcast %cst_47 : f32 to vector<16x128xf32>
    %cst_48 = arith.constant 0.000000e+00 : f32
    %89 = vector.broadcast %cst_48 : f32 to vector<16x128xf32>
    %c8_49 = arith.constant 8 : index
    %c129 = arith.constant 129 : index
    %90 = vector.load %arg7[%c8_49, %c129] : memref<25x257xf32, #tpu.memory_space<vmem>>, vector<16x128xf32>
    %c15_i32 = arith.constant 15 : i32
    %91 = vector.broadcast %c15_i32 : i32 to vector<16x128xi32>
    %92 = arith.cmpi slt, %24, %91 : vector<16x128xi32>
    %cst_50 = arith.constant 0.000000e+00 : f32
    %93 = vector.broadcast %cst_50 : f32 to vector<16x128xf32>
    %94 = arith.select %92, %90, %93 : vector<16x128xi1>, vector<16x128xf32>
    %95 = arith.subf %52, %94 : vector<16x128xf32>
    %96 = arith.select %69, %95, %88 : vector<16x128xi1>, vector<16x128xf32>
    %97 = arith.select %77, %95, %89 : vector<16x128xi1>, vector<16x128xf32>
    %c9 = arith.constant 9 : index
    %c129_51 = arith.constant 129 : index
    %98 = vector.load %arg7[%c9, %c129_51] : memref<25x257xf32, #tpu.memory_space<vmem>>, vector<16x128xf32>
    %cst_52 = arith.constant 0.000000e+00 : f32
    %99 = vector.broadcast %cst_52 : f32 to vector<16x128xf32>
    %100 = arith.select %92, %98, %99 : vector<16x128xi1>, vector<16x128xf32>
    %101 = arith.subf %52, %100 : vector<16x128xf32>
    %102 = arith.select %71, %101, %96 : vector<16x128xi1>, vector<16x128xf32>
    %103 = arith.select %81, %101, %97 : vector<16x128xi1>, vector<16x128xf32>
    %c9_53 = arith.constant 9 : index
    %c128_54 = arith.constant 128 : index
    %104 = vector.load %arg7[%c9_53, %c128_54] : memref<25x257xf32, #tpu.memory_space<vmem>>, vector<16x128xf32>
    %105 = arith.subf %52, %104 : vector<16x128xf32>
    %106 = arith.select %72, %105, %102 : vector<16x128xi1>, vector<16x128xf32>
    %107 = arith.select %83, %105, %103 : vector<16x128xi1>, vector<16x128xf32>
    %c9_55 = arith.constant 9 : index
    %c127_56 = arith.constant 127 : index
    %108 = vector.load %arg7[%c9_55, %c127_56] : memref<25x257xf32, #tpu.memory_space<vmem>>, vector<16x128xf32>
    %c1_i32_57 = arith.constant 1 : i32
    %109 = vector.broadcast %c1_i32_57 : i32 to vector<16x128xi32>
    %110 = arith.cmpi sge, %24, %109 : vector<16x128xi32>
    %cst_58 = arith.constant 0.000000e+00 : f32
    %111 = vector.broadcast %cst_58 : f32 to vector<16x128xf32>
    %112 = arith.select %110, %108, %111 : vector<16x128xi1>, vector<16x128xf32>
    %113 = arith.subf %52, %112 : vector<16x128xf32>
    %114 = arith.select %75, %113, %106 : vector<16x128xi1>, vector<16x128xf32>
    %115 = arith.select %86, %113, %107 : vector<16x128xi1>, vector<16x128xf32>
    %c8_59 = arith.constant 8 : index
    %c127_60 = arith.constant 127 : index
    %116 = vector.load %arg7[%c8_59, %c127_60] : memref<25x257xf32, #tpu.memory_space<vmem>>, vector<16x128xf32>
    %cst_61 = arith.constant 0.000000e+00 : f32
    %117 = vector.broadcast %cst_61 : f32 to vector<16x128xf32>
    %118 = arith.select %110, %116, %117 : vector<16x128xi1>, vector<16x128xf32>
    %119 = arith.subf %52, %118 : vector<16x128xf32>
    %120 = arith.select %77, %119, %114 : vector<16x128xi1>, vector<16x128xf32>
    %121 = arith.select %69, %119, %115 : vector<16x128xi1>, vector<16x128xf32>
    %c7_62 = arith.constant 7 : index
    %c127_63 = arith.constant 127 : index
    %122 = vector.load %arg7[%c7_62, %c127_63] : memref<25x257xf32, #tpu.memory_space<vmem>>, vector<16x128xf32>
    %cst_64 = arith.constant 0.000000e+00 : f32
    %123 = vector.broadcast %cst_64 : f32 to vector<16x128xf32>
    %124 = arith.select %110, %122, %123 : vector<16x128xi1>, vector<16x128xf32>
    %125 = arith.subf %52, %124 : vector<16x128xf32>
    %126 = arith.select %81, %125, %120 : vector<16x128xi1>, vector<16x128xf32>
    %127 = arith.select %71, %125, %121 : vector<16x128xi1>, vector<16x128xf32>
    %c7_65 = arith.constant 7 : index
    %c128_66 = arith.constant 128 : index
    %128 = vector.load %arg7[%c7_65, %c128_66] : memref<25x257xf32, #tpu.memory_space<vmem>>, vector<16x128xf32>
    %129 = arith.subf %52, %128 : vector<16x128xf32>
    %130 = arith.select %83, %129, %126 : vector<16x128xi1>, vector<16x128xf32>
    %131 = arith.select %72, %129, %127 : vector<16x128xi1>, vector<16x128xf32>
    %c7_67 = arith.constant 7 : index
    %c129_68 = arith.constant 129 : index
    %132 = vector.load %arg7[%c7_67, %c129_68] : memref<25x257xf32, #tpu.memory_space<vmem>>, vector<16x128xf32>
    %cst_69 = arith.constant 0.000000e+00 : f32
    %133 = vector.broadcast %cst_69 : f32 to vector<16x128xf32>
    %134 = arith.select %92, %132, %133 : vector<16x128xi1>, vector<16x128xf32>
    %135 = arith.subf %52, %134 : vector<16x128xf32>
    %136 = arith.select %86, %135, %130 : vector<16x128xi1>, vector<16x128xf32>
    %137 = arith.select %75, %135, %131 : vector<16x128xi1>, vector<16x128xf32>
    %138 = arith.minimumf %136, %137 : vector<16x128xf32>
    %cst_70 = arith.constant 0.000000e+00 : f32
    %139 = vector.broadcast %cst_70 : f32 to vector<16x128xf32>
    %140 = arith.cmpf ogt, %138, %139 : vector<16x128xf32>
    %cst_71 = arith.constant 0.000000e+00 : f32
    %141 = vector.broadcast %cst_71 : f32 to vector<16x128xf32>
    %142 = arith.select %140, %52, %141 : vector<16x128xi1>, vector<16x128xf32>
    %c0_72 = arith.constant 0 : index
    %c0_73 = arith.constant 0 : index
    %c0_74 = arith.constant 0 : index
    %c0_75 = arith.constant 0 : index
    %143 = vector.load %arg6[%c0_72, %c0_73, %c0_74, %c0_75] : memref<1x5x16x128xf32, #tpu.memory_space<vmem>>, vector<1x1x16x128xf32>
    %144 = vector.shape_cast %143 : vector<1x1x16x128xf32> to vector<16x128xf32>
    %145 = vector.shape_cast %142 : vector<16x128xf32> to vector<1x1x16x128xf32>
    tpu.vector_store %arg6[%c0_72, %c0_73, %c0_74, %c0_75], %145 {strides = array<i32>} : memref<1x5x16x128xf32, #tpu.memory_space<vmem>>, vector<1x1x16x128xf32>,
    %c8_76 = arith.constant 8 : index
    %c128_77 = arith.constant 128 : index
    %146 = vector.load %arg7[%c8_76, %c128_77] : memref<25x257xf32, #tpu.memory_space<vmem>>, vector<16x128xf32>
    tpu.vector_store %arg7[%c8_76, %c128_77], %142 {strides = array<i32>} : memref<25x257xf32, #tpu.memory_space<vmem>>, vector<16x128xf32>,
    %c7_78 = arith.constant 7 : index
    %c128_79 = arith.constant 128 : index
    %147 = vector.load %arg7[%c7_78, %c128_79] : memref<25x257xf32, #tpu.memory_space<vmem>>, vector<16x128xf32>
    %148 = arith.maximumf %142, %147 : vector<16x128xf32>
    %c9_80 = arith.constant 9 : index
    %c128_81 = arith.constant 128 : index
    %149 = vector.load %arg7[%c9_80, %c128_81] : memref<25x257xf32, #tpu.memory_space<vmem>>, vector<16x128xf32>
    %150 = arith.maximumf %148, %149 : vector<16x128xf32>
    %c8_82 = arith.constant 8 : index
    %c128_83 = arith.constant 128 : index
    %151 = vector.load %arg7[%c8_82, %c128_83] : memref<25x257xf32, #tpu.memory_space<vmem>>, vector<16x128xf32>
    tpu.vector_store %arg7[%c8_82, %c128_83], %150 {strides = array<i32>} : memref<25x257xf32, #tpu.memory_space<vmem>>, vector<16x128xf32>,
    %c8_84 = arith.constant 8 : index
    %c127_85 = arith.constant 127 : index
    %152 = vector.load %arg7[%c8_84, %c127_85] : memref<25x257xf32, #tpu.memory_space<vmem>>, vector<16x128xf32>
    %cst_86 = arith.constant 0.000000e+00 : f32
    %153 = vector.broadcast %cst_86 : f32 to vector<16x128xf32>
    %154 = arith.select %110, %152, %153 : vector<16x128xi1>, vector<16x128xf32>
    %155 = arith.maximumf %150, %154 : vector<16x128xf32>
    %c8_87 = arith.constant 8 : index
    %c129_88 = arith.constant 129 : index
    %156 = vector.load %arg7[%c8_87, %c129_88] : memref<25x257xf32, #tpu.memory_space<vmem>>, vector<16x128xf32>
    %cst_89 = arith.constant 0.000000e+00 : f32
    %157 = vector.broadcast %cst_89 : f32 to vector<16x128xf32>
    %158 = arith.select %92, %156, %157 : vector<16x128xi1>, vector<16x128xf32>
    %159 = arith.maximumf %155, %158 : vector<16x128xf32>
    %c0_90 = arith.constant 0 : index
    %c1_91 = arith.constant 1 : index
    %c0_92 = arith.constant 0 : index
    %c0_93 = arith.constant 0 : index
    %160 = vector.load %arg6[%c0_90, %c1_91, %c0_92, %c0_93] : memref<1x5x16x128xf32, #tpu.memory_space<vmem>>, vector<1x1x16x128xf32>
    %161 = vector.shape_cast %160 : vector<1x1x16x128xf32> to vector<16x128xf32>
    %162 = vector.shape_cast %159 : vector<16x128xf32> to vector<1x1x16x128xf32>
    tpu.vector_store %arg6[%c0_90, %c1_91, %c0_92, %c0_93], %162 {strides = array<i32>} : memref<1x5x16x128xf32, #tpu.memory_space<vmem>>, vector<1x1x16x128xf32>,
    %c8_94 = arith.constant 8 : index
    %c128_95 = arith.constant 128 : index
    %163 = vector.load %arg7[%c8_94, %c128_95] : memref<25x257xf32, #tpu.memory_space<vmem>>, vector<16x128xf32>
    tpu.vector_store %arg7[%c8_94, %c128_95], %159 {strides = array<i32>} : memref<25x257xf32, #tpu.memory_space<vmem>>, vector<16x128xf32>,
    %c7_96 = arith.constant 7 : index
    %c128_97 = arith.constant 128 : index
    %164 = vector.load %arg7[%c7_96, %c128_97] : memref<25x257xf32, #tpu.memory_space<vmem>>, vector<16x128xf32>
    %165 = arith.maximumf %159, %164 : vector<16x128xf32>
    %c9_98 = arith.constant 9 : index
    %c128_99 = arith.constant 128 : index
    %166 = vector.load %arg7[%c9_98, %c128_99] : memref<25x257xf32, #tpu.memory_space<vmem>>, vector<16x128xf32>
    %167 = arith.maximumf %165, %166 : vector<16x128xf32>
    %c8_100 = arith.constant 8 : index
    %c128_101 = arith.constant 128 : index
    %168 = vector.load %arg7[%c8_100, %c128_101] : memref<25x257xf32, #tpu.memory_space<vmem>>, vector<16x128xf32>
    tpu.vector_store %arg7[%c8_100, %c128_101], %167 {strides = array<i32>} : memref<25x257xf32, #tpu.memory_space<vmem>>, vector<16x128xf32>,
    %c8_102 = arith.constant 8 : index
    %c127_103 = arith.constant 127 : index
    %169 = vector.load %arg7[%c8_102, %c127_103] : memref<25x257xf32, #tpu.memory_space<vmem>>, vector<16x128xf32>
    %cst_104 = arith.constant 0.000000e+00 : f32
    %170 = vector.broadcast %cst_104 : f32 to vector<16x128xf32>
    %171 = arith.select %110, %169, %170 : vector<16x128xi1>, vector<16x128xf32>
    %172 = arith.maximumf %167, %171 : vector<16x128xf32>
    %c8_105 = arith.constant 8 : index
    %c129_106 = arith.constant 129 : index
    %173 = vector.load %arg7[%c8_105, %c129_106] : memref<25x257xf32, #tpu.memory_space<vmem>>, vector<16x128xf32>
    %cst_107 = arith.constant 0.000000e+00 : f32
    %174 = vector.broadcast %cst_107 : f32 to vector<16x128xf32>
    %175 = arith.select %92, %173, %174 : vector<16x128xi1>, vector<16x128xf32>
    %176 = arith.maximumf %172, %175 : vector<16x128xf32>
    %c0_108 = arith.constant 0 : index
    %c2_109 = arith.constant 2 : index
    %c0_110 = arith.constant 0 : index
    %c0_111 = arith.constant 0 : index
    %177 = vector.load %arg6[%c0_108, %c2_109, %c0_110, %c0_111] : memref<1x5x16x128xf32, #tpu.memory_space<vmem>>, vector<1x1x16x128xf32>
    %178 = vector.shape_cast %177 : vector<1x1x16x128xf32> to vector<16x128xf32>
    %179 = vector.shape_cast %176 : vector<16x128xf32> to vector<1x1x16x128xf32>
    tpu.vector_store %arg6[%c0_108, %c2_109, %c0_110, %c0_111], %179 {strides = array<i32>} : memref<1x5x16x128xf32, #tpu.memory_space<vmem>>, vector<1x1x16x128xf32>,
    %c8_112 = arith.constant 8 : index
    %c128_113 = arith.constant 128 : index
    %180 = vector.load %arg7[%c8_112, %c128_113] : memref<25x257xf32, #tpu.memory_space<vmem>>, vector<16x128xf32>
    tpu.vector_store %arg7[%c8_112, %c128_113], %176 {strides = array<i32>} : memref<25x257xf32, #tpu.memory_space<vmem>>, vector<16x128xf32>,
    %c7_114 = arith.constant 7 : index
    %c128_115 = arith.constant 128 : index
    %181 = vector.load %arg7[%c7_114, %c128_115] : memref<25x257xf32, #tpu.memory_space<vmem>>, vector<16x128xf32>
    %182 = arith.maximumf %176, %181 : vector<16x128xf32>
    %c9_116 = arith.constant 9 : index
    %c128_117 = arith.constant 128 : index
    %183 = vector.load %arg7[%c9_116, %c128_117] : memref<25x257xf32, #tpu.memory_space<vmem>>, vector<16x128xf32>
    %184 = arith.maximumf %182, %183 : vector<16x128xf32>
    %c8_118 = arith.constant 8 : index
    %c128_119 = arith.constant 128 : index
    %185 = vector.load %arg7[%c8_118, %c128_119] : memref<25x257xf32, #tpu.memory_space<vmem>>, vector<16x128xf32>
    tpu.vector_store %arg7[%c8_118, %c128_119], %184 {strides = array<i32>} : memref<25x257xf32, #tpu.memory_space<vmem>>, vector<16x128xf32>,
    %c8_120 = arith.constant 8 : index
    %c127_121 = arith.constant 127 : index
    %186 = vector.load %arg7[%c8_120, %c127_121] : memref<25x257xf32, #tpu.memory_space<vmem>>, vector<16x128xf32>
    %cst_122 = arith.constant 0.000000e+00 : f32
    %187 = vector.broadcast %cst_122 : f32 to vector<16x128xf32>
    %188 = arith.select %110, %186, %187 : vector<16x128xi1>, vector<16x128xf32>
    %189 = arith.maximumf %184, %188 : vector<16x128xf32>
    %c8_123 = arith.constant 8 : index
    %c129_124 = arith.constant 129 : index
    %190 = vector.load %arg7[%c8_123, %c129_124] : memref<25x257xf32, #tpu.memory_space<vmem>>, vector<16x128xf32>
    %cst_125 = arith.constant 0.000000e+00 : f32
    %191 = vector.broadcast %cst_125 : f32 to vector<16x128xf32>
    %192 = arith.select %92, %190, %191 : vector<16x128xi1>, vector<16x128xf32>
    %193 = arith.maximumf %189, %192 : vector<16x128xf32>
    %c0_126 = arith.constant 0 : index
    %c3 = arith.constant 3 : index
    %c0_127 = arith.constant 0 : index
    %c0_128 = arith.constant 0 : index
    %194 = vector.load %arg6[%c0_126, %c3, %c0_127, %c0_128] : memref<1x5x16x128xf32, #tpu.memory_space<vmem>>, vector<1x1x16x128xf32>
    %195 = vector.shape_cast %194 : vector<1x1x16x128xf32> to vector<16x128xf32>
    %196 = vector.shape_cast %193 : vector<16x128xf32> to vector<1x1x16x128xf32>
    tpu.vector_store %arg6[%c0_126, %c3, %c0_127, %c0_128], %196 {strides = array<i32>} : memref<1x5x16x128xf32, #tpu.memory_space<vmem>>, vector<1x1x16x128xf32>,
    %c8_129 = arith.constant 8 : index
    %c128_130 = arith.constant 128 : index
    %197 = vector.load %arg7[%c8_129, %c128_130] : memref<25x257xf32, #tpu.memory_space<vmem>>, vector<16x128xf32>
    tpu.vector_store %arg7[%c8_129, %c128_130], %193 {strides = array<i32>} : memref<25x257xf32, #tpu.memory_space<vmem>>, vector<16x128xf32>,
    %c7_131 = arith.constant 7 : index
    %c128_132 = arith.constant 128 : index
    %198 = vector.load %arg7[%c7_131, %c128_132] : memref<25x257xf32, #tpu.memory_space<vmem>>, vector<16x128xf32>
    %199 = arith.maximumf %193, %198 : vector<16x128xf32>
    %c9_133 = arith.constant 9 : index
    %c128_134 = arith.constant 128 : index
    %200 = vector.load %arg7[%c9_133, %c128_134] : memref<25x257xf32, #tpu.memory_space<vmem>>, vector<16x128xf32>
    %201 = arith.maximumf %199, %200 : vector<16x128xf32>
    %c8_135 = arith.constant 8 : index
    %c128_136 = arith.constant 128 : index
    %202 = vector.load %arg7[%c8_135, %c128_136] : memref<25x257xf32, #tpu.memory_space<vmem>>, vector<16x128xf32>
    tpu.vector_store %arg7[%c8_135, %c128_136], %201 {strides = array<i32>} : memref<25x257xf32, #tpu.memory_space<vmem>>, vector<16x128xf32>,
    %c8_137 = arith.constant 8 : index
    %c127_138 = arith.constant 127 : index
    %203 = vector.load %arg7[%c8_137, %c127_138] : memref<25x257xf32, #tpu.memory_space<vmem>>, vector<16x128xf32>
    %cst_139 = arith.constant 0.000000e+00 : f32
    %204 = vector.broadcast %cst_139 : f32 to vector<16x128xf32>
    %205 = arith.select %110, %203, %204 : vector<16x128xi1>, vector<16x128xf32>
    %206 = arith.maximumf %201, %205 : vector<16x128xf32>
    %c8_140 = arith.constant 8 : index
    %c129_141 = arith.constant 129 : index
    %207 = vector.load %arg7[%c8_140, %c129_141] : memref<25x257xf32, #tpu.memory_space<vmem>>, vector<16x128xf32>
    %cst_142 = arith.constant 0.000000e+00 : f32
    %208 = vector.broadcast %cst_142 : f32 to vector<16x128xf32>
    %209 = arith.select %92, %207, %208 : vector<16x128xi1>, vector<16x128xf32>
    %210 = arith.maximumf %206, %209 : vector<16x128xf32>
    %c0_143 = arith.constant 0 : index
    %c4 = arith.constant 4 : index
    %c0_144 = arith.constant 0 : index
    %c0_145 = arith.constant 0 : index
    %211 = vector.load %arg6[%c0_143, %c4, %c0_144, %c0_145] : memref<1x5x16x128xf32, #tpu.memory_space<vmem>>, vector<1x1x16x128xf32>
    %212 = vector.shape_cast %211 : vector<1x1x16x128xf32> to vector<16x128xf32>
    %213 = vector.shape_cast %210 : vector<16x128xf32> to vector<1x1x16x128xf32>
    tpu.vector_store %arg6[%c0_143, %c4, %c0_144, %c0_145], %213 {strides = array<i32>} : memref<1x5x16x128xf32, #tpu.memory_space<vmem>>, vector<1x1x16x128xf32>,
    return
  }
  func.func @transform_0(%arg0: i32) -> (i32, i32, i32, i32) {
    %c0_i32 = arith.constant 0 : i32
    %c0_i32_0 = arith.constant 0 : i32
    %c0_i32_1 = arith.constant 0 : i32
    %c0_i32_2 = arith.constant 0 : i32
    return %arg0, %c0_i32, %c0_i32_0, %c0_i32_1 : i32, i32, i32, i32
  }
  func.func @transform_1(%arg0: i32) -> (i32, i32) {
    %c0_i32 = arith.constant 0 : i32
    %c0_i32_0 = arith.constant 0 : i32
    %c0_i32_1 = arith.constant 0 : i32
    return %c0_i32, %c0_i32_0 : i32, i32
  }
  func.func @transform_2(%arg0: i32) -> (i32, i32) {
    %c0_i32 = arith.constant 0 : i32
    %c0_i32_0 = arith.constant 0 : i32
    %c0_i32_1 = arith.constant 0 : i32
    return %c0_i32, %c0_i32_0 : i32, i32
  }
  func.func @transform_3(%arg0: i32) -> (i32, i32) {
    %c0_i32 = arith.constant 0 : i32
    %c0_i32_0 = arith.constant 0 : i32
    %c0_i32_1 = arith.constant 0 : i32
    return %c0_i32, %c0_i32_0 : i32, i32
  }
  func.func @transform_4(%arg0: i32) -> (i32, i32) {
    %c0_i32 = arith.constant 0 : i32
    %c0_i32_0 = arith.constant 0 : i32
    %c0_i32_1 = arith.constant 0 : i32
    return %c0_i32, %c0_i32_0 : i32, i32
  }
  func.func @transform_5(%arg0: i32) -> (i32, i32, i32, i32) {
    %c0_i32 = arith.constant 0 : i32
    %c0_i32_0 = arith.constant 0 : i32
    %c0_i32_1 = arith.constant 0 : i32
    %c0_i32_2 = arith.constant 0 : i32
    return %arg0, %c0_i32, %c0_i32_0, %c0_i32_1 : i32, i32, i32, i32
  }
}

</mosaic_0001>

<llo_original>
// kernel: tpu_custom_call.1
$region0: #{tpu_custom_call.1}
  #allocation0 [shape = 'u32[]', space=smem, size = 0x4, offset = 0x4, fixed_abs, tag = 'smem constant byte address 0x4 - core index']
  #allocation1 [shape = 'u32[144,128]{1,0:T(1,128)}', space=vmem, size = 0x12000, scoped, tag = 'internal scratch']
  #allocation2 [shape = 'f32[25,257]{1,0:T(8,128)}', space=vmem, size = 0xc000, scoped, tag = 'scratch operand']
  %s0 = inlined_call_operand.hbm [shape: f32[1,3,16,128], index: 0, kind: input, shape index: {}]
  %s1 = inlined_call_operand.hbm [shape: f32[16,16], index: 1, kind: input, shape index: {}]
  %s2 = inlined_call_operand.hbm [shape: f32[128,128], index: 2, kind: input, shape index: {}]
  %s3 = inlined_call_operand.hbm [shape: f32[16,16], index: 3, kind: input, shape index: {}]
  %s4 = inlined_call_operand.hbm [shape: f32[128,128], index: 4, kind: input, shape index: {}]
  %s5 = inlined_call_operand.hbm [shape: f32[1,5,16,128], index: 5, kind: output, shape index: {}]
  %s6 = sld [smem:[#allocation0]]
  $region50: #{tpu_custom_call.1} parent=0
    _
  %s8 = ssub.s32 1, %s6
  %s9 = scalar_select 0, %s8, %s6
  $region1: #{tpu_custom_call.1} parent=0
    #allocation3 [shape = 'u8[24576]{0}', space=vmem, size = 0x6000, scoped, tag = 'input window, operand 0, single buffered']
    #allocation4 [shape = 's32[1]{0}', space=sflag, size = 0x4, scoped, tag = 'scoped memory for tpu_custom_call.1']
    #allocation5 [shape = 's32[1]{0}', space=sflag, size = 0x4, scoped, tag = 'scoped memory for tpu_custom_call.1']
    #allocation6 [shape = 'u8[8192]{0}', space=vmem, size = 0x2000, scoped, tag = 'input window, operand 1, single buffered']
    #allocation7 [shape = 's32[1]{0}', space=sflag, size = 0x4, scoped, tag = 'scoped memory for tpu_custom_call.1']
    #allocation8 [shape = 'u8[65536]{0}', space=vmem, size = 0x10000, scoped, tag = 'input window, operand 2, single buffered']
    #allocation9 [shape = 'u8[8192]{0}', space=vmem, size = 0x2000, scoped, tag = 'input window, operand 3, single buffered']
    #allocation10 [shape = 's32[1]{0}', space=sflag, size = 0x4, scoped, tag = 'scoped memory for tpu_custom_call.1']
    #allocation11 [shape = 'u8[65536]{0}', space=vmem, size = 0x10000, scoped, tag = 'input window, operand 4, single buffered']
    #allocation12 [shape = 'u8[40960]{0}', space=vmem, size = 0xa000, scoped, tag = 'output window, operand 0, single buffered']
    %10 = vsyncpa [#allocation4], 0
    %11 = vsyncpa [#allocation7], 0
    %12 = vsyncpa [#allocation10], 0
    %13 = vsyncpa [#allocation5], 0
    // Predicated region
    $region2: #{tpu_custom_call.1} parent=1 // pred_check
      _
    $region3: #{tpu_custom_call.1} parent=1 // pred_check_branch
      %15 = sbr.rel (0) target = $region5
    $region4: #{tpu_custom_call.1} parent=1 // pred_region
      %s17 = ssub.s32 768, 768
      %18 = vsyncadd [#allocation4], %s17
      %s19 = sshll.u32 [#allocation3], 4
      %s20 = int_to_ptr.vmem [resolvable:$true] %s19
      %25 = dma.hbm_to_vmem [thread:$0]  %s0, 768, %s20, [#allocation4], 128, 128, 8
    $region5: #{tpu_custom_call.1} parent=1 // pred_fallthru
      _
    // Predicated region
    $region6: #{tpu_custom_call.1} parent=1 // pred_check
      _
    $region7: #{tpu_custom_call.1} parent=1 // pred_check_branch
      %27 = sbr.rel (0) target = $region9
    $region8: #{tpu_custom_call.1} parent=1 // pred_region
      %s29 = ssub.s32 256, 256
      %30 = vsyncadd [#allocation7], %s29
      %s31 = sshll.u32 [#allocation6], 4
      %s32 = int_to_ptr.vmem [resolvable:$true] %s31
      %37 = dma.hbm_to_vmem [thread:$0]  %s1, 256, %s32, [#allocation7], 128, 128, 8
    $region9: #{tpu_custom_call.1} parent=1 // pred_fallthru
      _
    // Predicated region
    $region10: #{tpu_custom_call.1} parent=1 // pred_check
      _
    $region11: #{tpu_custom_call.1} parent=1 // pred_check_branch
      %39 = sbr.rel (0) target = $region13
    $region12: #{tpu_custom_call.1} parent=1 // pred_region
      %s41 = ssub.s32 2048, 2048
      %42 = vsyncadd [#allocation7], %s41
      %s43 = sshll.u32 [#allocation8], 4
      %s44 = int_to_ptr.vmem [resolvable:$true] %s43
      %49 = dma.hbm_to_vmem [thread:$0]  %s2, 2048, %s44, [#allocation7], 128, 128, 8
    $region13: #{tpu_custom_call.1} parent=1 // pred_fallthru
      _
    // Predicated region
    $region14: #{tpu_custom_call.1} parent=1 // pred_check
      _
    $region15: #{tpu_custom_call.1} parent=1 // pred_check_branch
      %51 = sbr.rel (0) target = $region17
    $region16: #{tpu_custom_call.1} parent=1 // pred_region
      %s53 = ssub.s32 256, 256
      %54 = vsyncadd [#allocation10], %s53
      %s55 = sshll.u32 [#allocation9], 4
      %s56 = int_to_ptr.vmem [resolvable:$true] %s55
      %61 = dma.hbm_to_vmem [thread:$0]  %s3, 256, %s56, [#allocation10], 128, 128, 8
    $region17: #{tpu_custom_call.1} parent=1 // pred_fallthru
      _
    // Predicated region
    $region18: #{tpu_custom_call.1} parent=1 // pred_check
      _
    $region19: #{tpu_custom_call.1} parent=1 // pred_check_branch
      %63 = sbr.rel (0) target = $region21
    $region20: #{tpu_custom_call.1} parent=1 // pred_region
      %s65 = ssub.s32 2048, 2048
      %66 = vsyncadd [#allocation10], %s65
      %s67 = sshll.u32 [#allocation11], 4
      %s68 = int_to_ptr.vmem [resolvable:$true] %s67
      %73 = dma.hbm_to_vmem [thread:$0]  %s4, 2048, %s68, [#allocation10], 128, 128, 8
    $region21: #{tpu_custom_call.1} parent=1 // pred_fallthru
      _
    // Predicated region
    $region22: #{tpu_custom_call.1} parent=1 // pred_check
      _
    $region23: #{tpu_custom_call.1} parent=1 // pred_check_branch
      %75 = sbr.rel (0) target = $region25
    $region24: #{tpu_custom_call.1} parent=1 // pred_region
      %76 = dma.done [#allocation4], 768
    $region25: #{tpu_custom_call.1} parent=1 // pred_fallthru
      _
    // Predicated region
    $region26: #{tpu_custom_call.1} parent=1 // pred_check
      _
    $region27: #{tpu_custom_call.1} parent=1 // pred_check_branch
      %78 = sbr.rel (0) target = $region29
    $region28: #{tpu_custom_call.1} parent=1 // pred_region
      %79 = dma.done [#allocation7], 256
    $region29: #{tpu_custom_call.1} parent=1 // pred_fallthru
      _
    // Predicated region
    $region30: #{tpu_custom_call.1} parent=1 // pred_check
      _
    $region31: #{tpu_custom_call.1} parent=1 // pred_check_branch
      %81 = sbr.rel (0) target = $region33
    $region32: #{tpu_custom_call.1} parent=1 // pred_region
      %82 = dma.done [#allocation7], 2048
    $region33: #{tpu_custom_call.1} parent=1 // pred_fallthru
      _
    // Predicated region
    $region34: #{tpu_custom_call.1} parent=1 // pred_check
      _
    $region35: #{tpu_custom_call.1} parent=1 // pred_check_branch
      %84 = sbr.rel (0) target = $region37
    $region36: #{tpu_custom_call.1} parent=1 // pred_region
      %85 = dma.done [#allocation10], 256
    $region37: #{tpu_custom_call.1} parent=1 // pred_fallthru
      _
    // Predicated region
    $region38: #{tpu_custom_call.1} parent=1 // pred_check
      _
    $region39: #{tpu_custom_call.1} parent=1 // pred_check_branch
      %87 = sbr.rel (0) target = $region41
    $region40: #{tpu_custom_call.1} parent=1 // pred_region
      %88 = dma.done [#allocation10], 2048
    $region41: #{tpu_custom_call.1} parent=1 // pred_fallthru
      _
    %v89 = vlaneseq
    %vm90 = vcmp.ge.s32.totalorder %v89, 127
    %vm91 = vcmp.lt.s32.totalorder %v89, 257
    %vm92 = vmand %vm90, %vm91
    %s93 = scalar_lea.vmem [#allocation2], 7
    %94 = vst.msk [vmem:[%s93] ss:$8 sm:$0x7] %vm92, 0.0
    %95 = vst.msk [vmem:[%s93] ss:$8 sm:$0x0] %vm92, 0.0
    %s96 = scalar_lea.vmem [#allocation2], 72
    %97 = vst.msk [vmem:[%s96] ss:$8 sm:$0x7] %vm92, 0.0
    %98 = vst.msk [vmem:[%s96] ss:$8 sm:$0x0] %vm92, 0.0
    %vm99 = vcmask 1048568
    %100 = vst.msk [vmem:[#allocation2 + $0x18] sm:$0xff] %vm99, 0.0
    %101 = vst.msk [vmem:[#allocation2 + $0x30] sm:$0xff] %vm99, 0.0
    %vm102 = vcmask 7168
    %103 = vst.msk [vmem:[#allocation2 + $0x28] sm:$0xff] %vm102, 0.0
    %104 = vst.msk [vmem:[#allocation2 + $0x40] sm:$0xff] %vm102, 0.0
    %v105 = vlaneseq
    %v106 = vand.u32 %v105, 127
    %vm107 = vcmp.lt.s32.totalorder %v106, 0
    %v108 = vsub.s32 0, %v106
    %v109 = vsel %vm107, %v108, %v106
    %v110 = vshrl.u32 %v109, 4
    %v111 = vand.u32 %v109, 15
    %v112 = vsub.s32 0, %v111
    %v113 = vsel %vm107, %v112, %v111
    %vm114 = vcmp.ne.s32.totalorder %v113, 0
    %vm115 = vcmp.lt.s32.totalorder %v113, 0
    %vm116 = vmand %vm115, %vm114
    %v117 = vadd.s32 %v113, 16
    %v118 = vsel %vm116, %v117, %v113
    %v119 = vld [vmem:[#allocation3] sm:$0xff]
    %v120 = vld [vmem:[#allocation3 + $0x8] sm:$0xff]
    %s121 = scalar_lea.vmem [#allocation3], 16
    %v122 = vld [vmem:[%s121] sm:$0xff]
    %v123 = vld [vmem:[%s121 + $0x8] sm:$0xff]
    %s124 = scalar_lea.vmem [#allocation3], 32
    %v125 = vld [vmem:[%s124] sm:$0xff]
    %v126 = vld [vmem:[%s124 + $0x8] sm:$0xff]
    %v127 = vmul.f32 %v125, 0.299
    %v128 = vmul.f32 %v126, 0.299
    %v129 = vmul.f32 %v122, 0.587
    %v130 = vmul.f32 %v123, 0.587
    %v131 = vadd.f32 %v127, %v129
    %v132 = vadd.f32 %v128, %v130
    %v133 = vmul.f32 %v119, 0.114
    %v134 = vmul.f32 %v120, 0.114
    %v135 = vadd.f32 %v131, %v133
    %v136 = vadd.f32 %v132, %v134
    %v137 = vld [vmem:[#allocation6] sm:$0xff]
    %v138 = vld [vmem:[#allocation6 + $0x8] sm:$0xff]
    %vm139 = vcmask 130048
    %v141 = vsel %vm139, %v137, 0
    %v144 = vsel %vm139, %v138, 0
    %146 = vmatprep.subr.mxu0 0.0
    %147 = vmatpush1.msra.mxu0 %v135
    %148 = vmatprep.subr.mxu0 0.0
    %149 = vmatpush1.msra.mxu0 %v136
    %150 = vmatprep.subr.mxu0 0.0
    %151 = vmatpush1.msra.mxu0 0.0
    %152 = vmatprep.subr.mxu0 0.0
    %153 = vmatpush1.msra.mxu0 0.0
    %154 = vmatprep.subr.mxu0 0.0
    %155 = vmatpush1.msra.mxu0 0.0
    %156 = vmatprep.subr.mxu0 0.0
    %157 = vmatpush1.msra.mxu0 0.0
    %158 = vmatprep.subr.mxu0 0.0
    %159 = vmatpush1.msra.mxu0 0.0
    %160 = vmatprep.subr.mxu0 0.0
    %161 = vmatpush1.msra.mxu0 0.0
    %162 = vmatprep.subr.mxu0 0.0
    %163 = vmatpush1.msra.mxu0 0.0
    %164 = vmatprep.subr.mxu0 0.0
    %165 = vmatpush1.msra.mxu0 0.0
    %166 = vmatprep.subr.mxu0 0.0
    %167 = vmatpush1.msra.mxu0 0.0
    %168 = vmatprep.subr.mxu0 0.0
    %169 = vmatpush1.msra.mxu0 0.0
    %170 = vmatprep.subr.mxu0 0.0
    %171 = vmatpush1.msra.mxu0 0.0
    %172 = vmatprep.subr.mxu0 0.0
    %173 = vmatpush1.msra.mxu0 0.0
    %174 = vmatprep.subr.mxu0 0.0
    %175 = vmatpush1.msra.mxu0 0.0
    %176 = vmatprep.subr.mxu0 0.0
    %177 = vmatpush1.msra.mxu0 0.0
    %178 = vmatprep.subr.mxu0 0.0
    %179 = vmatpush1.msra.mxu0 0.0
    %180 = vmatprep.subr.mxu0 0.0
    %181 = vmatpush1.msra.mxu0 0.0
    %182 = vmatprep.subr.mxu0 0.0
    %183 = vmatpush1.msra.mxu0 0.0
    %184 = vmatprep.subr.mxu0 0.0
    %185 = vmatpush1.msra.mxu0 0.0
    %186 = vmatprep.subr.mxu0 0.0
    %187 = vmatpush1.msra.mxu0 0.0
    %188 = vmatprep.subr.mxu0 0.0
    %189 = vmatpush1.msra.mxu0 0.0
    %190 = vmatprep.subr.mxu0 0.0
    %191 = vmatpush1.msra.mxu0 0.0
    %192 = vmatprep.subr.mxu0 0.0
    %193 = vmatpush1.msra.mxu0 0.0
    %194 = vmatprep.subr.mxu0 0.0
    %195 = vmatpush1.msra.mxu0 0.0
    %196 = vmatprep.subr.mxu0 0.0
    %197 = vmatpush1.msra.mxu0 0.0
    %198 = vmatprep.subr.mxu0 0.0
    %199 = vmatpush1.msra.mxu0 0.0
    %200 = vmatprep.subr.mxu0 0.0
    %201 = vmatpush1.msra.mxu0 0.0
    %202 = vmatprep.subr.mxu0 0.0
    %203 = vmatpush1.msra.mxu0 0.0
    %204 = vmatprep.subr.mxu0 0.0
    %205 = vmatpush1.msra.mxu0 0.0
    %206 = vmatprep.subr.mxu0 0.0
    %207 = vmatpush1.msra.mxu0 0.0
    %208 = vmatprep.subr.mxu0 0.0
    %209 = vmatpush1.msra.mxu0 0.0
    %210 = vmatprep.mubr.f32.mxu0 0.0
    %211 = vmatmul.mubr.f32.gmra.mrb[0].mxu0 %v141
    %v212 = vpop.f32.mrb[0].mxu0
    %v213 = vadd.f32 0.0, %v212
    %v214 = vpop.f32.mrb[0].mxu0
    %215 = vmatprep.mubr.f32.mxu0 0.0
    %216 = vmatmul.mubr.f32.gmra.mrb[0].mxu0 %v144
    %v217 = vpop.f32.mrb[0].mxu0
    %v218 = vadd.f32 0.0, %v217
    %v219 = vpop.f32.mrb[0].mxu0
    %220 = vdwg.mxu0
    %v221 = vld [vmem:[#allocation8] sm:$0xff]
    %v222 = vld [vmem:[#allocation8 + $0x8] sm:$0xff]
    %v223 = vld [vmem:[#allocation8 + $0x10] sm:$0xff]
    %v224 = vld [vmem:[#allocation8 + $0x18] sm:$0xff]
    %v225 = vld [vmem:[#allocation8 + $0x20] sm:$0xff]
    %v226 = vld [vmem:[#allocation8 + $0x28] sm:$0xff]
    %v227 = vld [vmem:[#allocation8 + $0x30] sm:$0xff]
    %v228 = vld [vmem:[#allocation8 + $0x38] sm:$0xff]
    %v229 = vld [vmem:[#allocation8 + $0x40] sm:$0xff]
    %v230 = vld [vmem:[#allocation8 + $0x48] sm:$0xff]
    %v231 = vld [vmem:[#allocation8 + $0x50] sm:$0xff]
    %v232 = vld [vmem:[#allocation8 + $0x58] sm:$0xff]
    %v233 = vld [vmem:[#allocation8 + $0x60] sm:$0xff]
    %v234 = vld [vmem:[#allocation8 + $0x68] sm:$0xff]
    %v235 = vld [vmem:[#allocation8 + $0x70] sm:$0xff]
    %v236 = vld [vmem:[#allocation8 + $0x78] sm:$0xff]
    %237 = vmatprep.subr.mxu0 0.0
    %238 = vmatpush1.msra.mxu0 %v221
    %239 = vmatprep.subr.mxu0 0.0
    %240 = vmatpush1.msra.mxu0 %v222
    %241 = vmatprep.subr.mxu0 0.0
    %242 = vmatpush1.msra.mxu0 %v223
    %243 = vmatprep.subr.mxu0 0.0
    %244 = vmatpush1.msra.mxu0 %v224
    %245 = vmatprep.subr.mxu0 0.0
    %246 = vmatpush1.msra.mxu0 %v225
    %247 = vmatprep.subr.mxu0 0.0
    %248 = vmatpush1.msra.mxu0 %v226
    %249 = vmatprep.subr.mxu0 0.0
    %250 = vmatpush1.msra.mxu0 %v227
    %251 = vmatprep.subr.mxu0 0.0
    %252 = vmatpush1.msra.mxu0 %v228
    %253 = vmatprep.subr.mxu0 0.0
    %254 = vmatpush1.msra.mxu0 %v229
    %255 = vmatprep.subr.mxu0 0.0
    %256 = vmatpush1.msra.mxu0 %v230
    %257 = vmatprep.subr.mxu0 0.0
    %258 = vmatpush1.msra.mxu0 %v231
    %259 = vmatprep.subr.mxu0 0.0
    %260 = vmatpush1.msra.mxu0 %v232
    %261 = vmatprep.subr.mxu0 0.0
    %262 = vmatpush1.msra.mxu0 %v233
    %263 = vmatprep.subr.mxu0 0.0
    %264 = vmatpush1.msra.mxu0 %v234
    %265 = vmatprep.subr.mxu0 0.0
    %266 = vmatpush1.msra.mxu0 %v235
    %267 = vmatprep.subr.mxu0 0.0
    %268 = vmatpush1.msra.mxu0 %v236
    %269 = vmatprep.subr.mxu0 0.0
    %270 = vmatpush1.msra.mxu0 0.0
    %271 = vmatprep.subr.mxu0 0.0
    %272 = vmatpush1.msra.mxu0 0.0
    %273 = vmatprep.subr.mxu0 0.0
    %274 = vmatpush1.msra.mxu0 0.0
    %275 = vmatprep.subr.mxu0 0.0
    %276 = vmatpush1.msra.mxu0 0.0
    %277 = vmatprep.subr.mxu0 0.0
    %278 = vmatpush1.msra.mxu0 0.0
    %279 = vmatprep.subr.mxu0 0.0
    %280 = vmatpush1.msra.mxu0 0.0
    %281 = vmatprep.subr.mxu0 0.0
    %282 = vmatpush1.msra.mxu0 0.0
    %283 = vmatprep.subr.mxu0 0.0
    %284 = vmatpush1.msra.mxu0 0.0
    %285 = vmatprep.subr.mxu0 0.0
    %286 = vmatpush1.msra.mxu0 0.0
    %287 = vmatprep.subr.mxu0 0.0
    %288 = vmatpush1.msra.mxu0 0.0
    %289 = vmatprep.subr.mxu0 0.0
    %290 = vmatpush1.msra.mxu0 0.0
    %291 = vmatprep.subr.mxu0 0.0
    %292 = vmatpush1.msra.mxu0 0.0
    %293 = vmatprep.subr.mxu0 0.0
    %294 = vmatpush1.msra.mxu0 0.0
    %295 = vmatprep.subr.mxu0 0.0
    %296 = vmatpush1.msra.mxu0 0.0
    %297 = vmatprep.subr.mxu0 0.0
    %298 = vmatpush1.msra.mxu0 0.0
    %299 = vmatprep.subr.mxu0 0.0
    %300 = vmatpush1.msra.mxu0 0.0
    %301 = vmatprep.mubr.f32.mxu0 0.0
    %302 = vmatmul.mubr.f32.gmra.mrb[0].mxu0 %v213
    %v303 = vpop.f32.mrb[0].mxu0
    %v304 = vadd.f32 0.0, %v303
    %v305 = vpop.f32.mrb[0].mxu0
    %306 = vmatprep.mubr.f32.mxu0 0.0
    %307 = vmatmul.mubr.f32.gmra.mrb[0].mxu0 %v218
    %v308 = vpop.f32.mrb[0].mxu0
    %v309 = vadd.f32 0.0, %v308
    %v310 = vpop.f32.mrb[0].mxu0
    %311 = vdwg.mxu0
    %v312 = vld [vmem:[#allocation9] sm:$0xff]
    %v313 = vld [vmem:[#allocation9 + $0x8] sm:$0xff]
    %v315 = vsel %vm139, %v312, 0
    %v318 = vsel %vm139, %v313, 0
    %320 = vmatprep.subr.mxu0 0.0
    %321 = vmatpush1.msra.mxu0 %v135
    %322 = vmatprep.subr.mxu0 0.0
    %323 = vmatpush1.msra.mxu0 %v136
    %324 = vmatprep.subr.mxu0 0.0
    %325 = vmatpush1.msra.mxu0 0.0
    %326 = vmatprep.subr.mxu0 0.0
    %327 = vmatpush1.msra.mxu0 0.0
    %328 = vmatprep.subr.mxu0 0.0
    %329 = vmatpush1.msra.mxu0 0.0
    %330 = vmatprep.subr.mxu0 0.0
    %331 = vmatpush1.msra.mxu0 0.0
    %332 = vmatprep.subr.mxu0 0.0
    %333 = vmatpush1.msra.mxu0 0.0
    %334 = vmatprep.subr.mxu0 0.0
    %335 = vmatpush1.msra.mxu0 0.0
    %336 = vmatprep.subr.mxu0 0.0
    %337 = vmatpush1.msra.mxu0 0.0
    %338 = vmatprep.subr.mxu0 0.0
    %339 = vmatpush1.msra.mxu0 0.0
    %340 = vmatprep.subr.mxu0 0.0
    %341 = vmatpush1.msra.mxu0 0.0
    %342 = vmatprep.subr.mxu0 0.0
    %343 = vmatpush1.msra.mxu0 0.0
    %344 = vmatprep.subr.mxu0 0.0
    %345 = vmatpush1.msra.mxu0 0.0
    %346 = vmatprep.subr.mxu0 0.0
    %347 = vmatpush1.msra.mxu0 0.0
    %348 = vmatprep.subr.mxu0 0.0
    %349 = vmatpush1.msra.mxu0 0.0
    %350 = vmatprep.subr.mxu0 0.0
    %351 = vmatpush1.msra.mxu0 0.0
    %352 = vmatprep.subr.mxu0 0.0
    %353 = vmatpush1.msra.mxu0 0.0
    %354 = vmatprep.subr.mxu0 0.0
    %355 = vmatpush1.msra.mxu0 0.0
    %356 = vmatprep.subr.mxu0 0.0
    %357 = vmatpush1.msra.mxu0 0.0
    %358 = vmatprep.subr.mxu0 0.0
    %359 = vmatpush1.msra.mxu0 0.0
    %360 = vmatprep.subr.mxu0 0.0
    %361 = vmatpush1.msra.mxu0 0.0
    %362 = vmatprep.subr.mxu0 0.0
    %363 = vmatpush1.msra.mxu0 0.0
    %364 = vmatprep.subr.mxu0 0.0
    %365 = vmatpush1.msra.mxu0 0.0
    %366 = vmatprep.subr.mxu0 0.0
    %367 = vmatpush1.msra.mxu0 0.0
    %368 = vmatprep.subr.mxu0 0.0
    %369 = vmatpush1.msra.mxu0 0.0
    %370 = vmatprep.subr.mxu0 0.0
    %371 = vmatpush1.msra.mxu0 0.0
    %372 = vmatprep.subr.mxu0 0.0
    %373 = vmatpush1.msra.mxu0 0.0
    %374 = vmatprep.subr.mxu0 0.0
    %375 = vmatpush1.msra.mxu0 0.0
    %376 = vmatprep.subr.mxu0 0.0
    %377 = vmatpush1.msra.mxu0 0.0
    %378 = vmatprep.subr.mxu0 0.0
    %379 = vmatpush1.msra.mxu0 0.0
    %380 = vmatprep.subr.mxu0 0.0
    %381 = vmatpush1.msra.mxu0 0.0
    %382 = vmatprep.subr.mxu0 0.0
    %383 = vmatpush1.msra.mxu0 0.0
    %384 = vmatprep.mubr.f32.mxu0 0.0
    %385 = vmatmul.mubr.f32.gmra.mrb[0].mxu0 %v315
    %v386 = vpop.f32.mrb[0].mxu0
    %v387 = vadd.f32 0.0, %v386
    %v388 = vpop.f32.mrb[0].mxu0
    %389 = vmatprep.mubr.f32.mxu0 0.0
    %390 = vmatmul.mubr.f32.gmra.mrb[0].mxu0 %v318
    %v391 = vpop.f32.mrb[0].mxu0
    %v392 = vadd.f32 0.0, %v391
    %v393 = vpop.f32.mrb[0].mxu0
    %394 = vdwg.mxu0
    %v395 = vld [vmem:[#allocation11] sm:$0xff]
    %v396 = vld [vmem:[#allocation11 + $0x8] sm:$0xff]
    %v397 = vld [vmem:[#allocation11 + $0x10] sm:$0xff]
    %v398 = vld [vmem:[#allocation11 + $0x18] sm:$0xff]
    %v399 = vld [vmem:[#allocation11 + $0x20] sm:$0xff]
    %v400 = vld [vmem:[#allocation11 + $0x28] sm:$0xff]
    %v401 = vld [vmem:[#allocation11 + $0x30] sm:$0xff]
    %v402 = vld [vmem:[#allocation11 + $0x38] sm:$0xff]
    %v403 = vld [vmem:[#allocation11 + $0x40] sm:$0xff]
    %v404 = vld [vmem:[#allocation11 + $0x48] sm:$0xff]
    %v405 = vld [vmem:[#allocation11 + $0x50] sm:$0xff]
    %v406 = vld [vmem:[#allocation11 + $0x58] sm:$0xff]
    %v407 = vld [vmem:[#allocation11 + $0x60] sm:$0xff]
    %v408 = vld [vmem:[#allocation11 + $0x68] sm:$0xff]
    %v409 = vld [vmem:[#allocation11 + $0x70] sm:$0xff]
    %v410 = vld [vmem:[#allocation11 + $0x78] sm:$0xff]
    %411 = vmatprep.subr.mxu0 0.0
    %412 = vmatpush1.msra.mxu0 %v395
    %413 = vmatprep.subr.mxu0 0.0
    %414 = vmatpush1.msra.mxu0 %v396
    %415 = vmatprep.subr.mxu0 0.0
    %416 = vmatpush1.msra.mxu0 %v397
    %417 = vmatprep.subr.mxu0 0.0
    %418 = vmatpush1.msra.mxu0 %v398
    %419 = vmatprep.subr.mxu0 0.0
    %420 = vmatpush1.msra.mxu0 %v399
    %421 = vmatprep.subr.mxu0 0.0
    %422 = vmatpush1.msra.mxu0 %v400
    %423 = vmatprep.subr.mxu0 0.0
    %424 = vmatpush1.msra.mxu0 %v401
    %425 = vmatprep.subr.mxu0 0.0
    %426 = vmatpush1.msra.mxu0 %v402
    %427 = vmatprep.subr.mxu0 0.0
    %428 = vmatpush1.msra.mxu0 %v403
    %429 = vmatprep.subr.mxu0 0.0
    %430 = vmatpush1.msra.mxu0 %v404
    %431 = vmatprep.subr.mxu0 0.0
    %432 = vmatpush1.msra.mxu0 %v405
    %433 = vmatprep.subr.mxu0 0.0
    %434 = vmatpush1.msra.mxu0 %v406
    %435 = vmatprep.subr.mxu0 0.0
    %436 = vmatpush1.msra.mxu0 %v407
    %437 = vmatprep.subr.mxu0 0.0
    %438 = vmatpush1.msra.mxu0 %v408
    %439 = vmatprep.subr.mxu0 0.0
    %440 = vmatpush1.msra.mxu0 %v409
    %441 = vmatprep.subr.mxu0 0.0
    %442 = vmatpush1.msra.mxu0 %v410
    %443 = vmatprep.subr.mxu0 0.0
    %444 = vmatpush1.msra.mxu0 0.0
    %445 = vmatprep.subr.mxu0 0.0
    %446 = vmatpush1.msra.mxu0 0.0
    %447 = vmatprep.subr.mxu0 0.0
    %448 = vmatpush1.msra.mxu0 0.0
    %449 = vmatprep.subr.mxu0 0.0
    %450 = vmatpush1.msra.mxu0 0.0
    %451 = vmatprep.subr.mxu0 0.0
    %452 = vmatpush1.msra.mxu0 0.0
    %453 = vmatprep.subr.mxu0 0.0
    %454 = vmatpush1.msra.mxu0 0.0
    %455 = vmatprep.subr.mxu0 0.0
    %456 = vmatpush1.msra.mxu0 0.0
    %457 = vmatprep.subr.mxu0 0.0
    %458 = vmatpush1.msra.mxu0 0.0
    %459 = vmatprep.subr.mxu0 0.0
    %460 = vmatpush1.msra.mxu0 0.0
    %461 = vmatprep.subr.mxu0 0.0
    %462 = vmatpush1.msra.mxu0 0.0
    %463 = vmatprep.subr.mxu0 0.0
    %464 = vmatpush1.msra.mxu0 0.0
    %465 = vmatprep.subr.mxu0 0.0
    %466 = vmatpush1.msra.mxu0 0.0
    %467 = vmatprep.subr.mxu0 0.0
    %468 = vmatpush1.msra.mxu0 0.0
    %469 = vmatprep.subr.mxu0 0.0
    %470 = vmatpush1.msra.mxu0 0.0
    %471 = vmatprep.subr.mxu0 0.0
    %472 = vmatpush1.msra.mxu0 0.0
    %473 = vmatprep.subr.mxu0 0.0
    %474 = vmatpush1.msra.mxu0 0.0
    %475 = vmatprep.mubr.f32.mxu0 0.0
    %476 = vmatmul.mubr.f32.gmra.mrb[0].mxu0 %v387
    %v477 = vpop.f32.mrb[0].mxu0
    %v478 = vadd.f32 0.0, %v477
    %v479 = vpop.f32.mrb[0].mxu0
    %480 = vmatprep.mubr.f32.mxu0 0.0
    %481 = vmatmul.mubr.f32.gmra.mrb[0].mxu0 %v392
    %v482 = vpop.f32.mrb[0].mxu0
    %v483 = vadd.f32 0.0, %v482
    %v484 = vpop.f32.mrb[0].mxu0
    %485 = vdwg.mxu0
    %v486 = vmul.f32 %v304, %v304
    %v487 = vmul.f32 %v309, %v309
    %v488 = vmul.f32 %v478, %v478
    %v489 = vmul.f32 %v483, %v483
    %v490 = vadd.f32 %v486, %v488
    %v491 = vadd.f32 %v487, %v489
    %v492 = vadd.f32 %v490, 1e-06
    %v493 = vadd.f32 %v491, 1e-06
    %v494 = vrsqrt.pop %v492
    %v495 = vmul.f32 %v492, %v494
    %vm496 = vcmp.eq.f32.partialorder %v492, inf
    %v497 = vsel %vm496, %v492, %v495
    %vm498 = vcmp.eq.f32.partialorder %v492, 0.0
    %v499 = vand.u32 %v492, 2147483648
    %v500 = vsel %vm498, %v499, %v497
    %v501 = vrsqrt.pop %v493
    %v502 = vmul.f32 %v493, %v501
    %vm503 = vcmp.eq.f32.partialorder %v493, inf
    %v504 = vsel %vm503, %v493, %v502
    %vm505 = vcmp.eq.f32.partialorder %v493, 0.0
    %v506 = vand.u32 %v493, 2147483648
    %v507 = vsel %vm505, %v506, %v504
    %v508 = vand.u32 2147483647, %v304
    %v509 = vand.u32 2147483647, %v309
    %v510 = vand.u32 2147483647, %v478
    %v511 = vand.u32 2147483647, %v483
    %vm512 = vcmp.ge.f32.partialorder %v304, 0.0
    %vm513 = vcmp.ge.f32.partialorder %v309, 0.0
    %vm514 = vcmp.ge.f32.partialorder %v478, 0.0
    %vm515 = vcmp.ge.f32.partialorder %v483, 0.0
    %v516 = vmul.f32 %v508, 0.41421357
    %v517 = vmul.f32 %v509, 0.41421357
    %vm518 = vcmp.le.f32.partialorder %v510, %v516
    %vm519 = vcmp.le.f32.partialorder %v511, %v517
    %vm520 = vmxor %vm518, 1
    %vm521 = vmxor %vm519, 1
    %v522 = vmul.f32 %v510, 0.41421357
    %v523 = vmul.f32 %v511, 0.41421357
    %vm524 = vcmp.le.f32.partialorder %v508, %v522
    %vm525 = vcmp.le.f32.partialorder %v509, %v523
    %vm526 = vmand %vm520, %vm524
    %vm527 = vmand %vm521, %vm525
    %vm528 = vmor %vm518, %vm526
    %vm529 = vmor %vm519, %vm527
    %vm530 = vmxor %vm528, 1
    %vm531 = vmxor %vm529, 1
    %vm532 = vmand %vm518, %vm512
    %vm533 = vmand %vm519, %vm513
    %vm534 = vmand %vm512, %vm514
    %vm535 = vmand %vm513, %vm515
    %vm536 = vmand %vm530, %vm534
    %vm537 = vmand %vm531, %vm535
    %vm538 = vmand %vm526, %vm514
    %vm539 = vmand %vm527, %vm515
    %vm540 = vmxor %vm512, 1
    %vm541 = vmxor %vm513, 1
    %vm542 = vmand %vm540, %vm514
    %vm543 = vmand %vm541, %vm515
    %vm544 = vmand %vm530, %vm542
    %vm545 = vmand %vm531, %vm543
    %vm546 = vmand %vm518, %vm540
    %vm547 = vmand %vm519, %vm541
    %vm548 = vmxor %vm514, 1
    %vm549 = vmxor %vm515, 1
    %vm550 = vmand %vm540, %vm548
    %vm551 = vmand %vm541, %vm549
    %vm552 = vmand %vm530, %vm550
    %vm553 = vmand %vm531, %vm551
    %vm554 = vmand %vm526, %vm548
    %vm555 = vmand %vm527, %vm549
    %vm556 = vmand %vm512, %vm548
    %vm557 = vmand %vm513, %vm549
    %vm558 = vmand %vm530, %vm556
    %vm559 = vmand %vm531, %vm557
    %560 = vst [vmem:[#allocation2 + $0x20] sm:$0xff] %v500
    %561 = vst [vmem:[#allocation2 + $0x38] sm:$0xff] %v507
    %v562 = vld [vmem:[#allocation2 + $0x20] sm:$0xff]
    %v563 = vld [vmem:[#allocation2 + $0x28] sm:$0xff]
    %v564 = vld [vmem:[#allocation2 + $0x38] sm:$0xff]
    %v565 = vld [vmem:[#allocation2 + $0x40] sm:$0xff]
    %vm566 = vcmp.lt.s32.totalorder %v118, 15
    %571 = vrot.lane.b32.xlu0 %v562, 127
    %v572 = vpop.permute.xlu0 %571
    %573 = vrot.lane.b32.xlu0 %v563, 127
    %v574 = vpop.permute.xlu0 %573
    %575 = vrot.lane.b32.xlu0 %v564, 127
    %v576 = vpop.permute.xlu0 %575
    %577 = vrot.lane.b32.xlu0 %v565, 127
    %v578 = vpop.permute.xlu0 %577
    %vm579 = vcmask 1039360
    %v580 = vsel %vm579, %v572, %v574
    %v581 = vsel %vm579, %v576, %v578
    %v584 = vsel %vm566, %v580, 0.0
    %v585 = vsel %vm566, %v581, 0.0
    %v586 = vsub.f32 %v500, %v584
    %v587 = vsub.f32 %v507, %v585
    %v588 = vsel %vm532, %v586, 0.0
    %v589 = vsel %vm533, %v587, 0.0
    %v590 = vsel %vm546, %v586, 0.0
    %v591 = vsel %vm547, %v587, 0.0
    %v592 = vld [vmem:[#allocation2 + $0x20] sm:$0xfe]
    %v593 = vld [vmem:[#allocation2 + $0x28] sm:$0xfe]
    %v594 = vld [vmem:[#allocation2 + $0x50] sm:$0x1]
    %v595 = vld [vmem:[#allocation2 + $0x58] sm:$0x1]
    %vm600 = vcmask 1046528
    %v601 = vrot.slane %v592, 1
    %v602 = vrot.slane %v564, 1
    %v603 = vsel %vm600, %v601, %v602
    %v604 = vrot.slane %v593, 1
    %v605 = vrot.slane %v565, 1
    %v606 = vsel %vm600, %v604, %v605
    %v607 = vrot.slane %v594, 1
    %v608 = vsel %vm600, %v602, %v607
    %v609 = vrot.slane %v595, 1
    %v610 = vsel %vm600, %v605, %v609
    %611 = vrot.lane.b32.xlu0 %v603, 127
    %v612 = vpop.permute.xlu0 %611
    %613 = vrot.lane.b32.xlu0 %v606, 127
    %v614 = vpop.permute.xlu0 %613
    %615 = vrot.lane.b32.xlu0 %v608, 127
    %v616 = vpop.permute.xlu0 %615
    %617 = vrot.lane.b32.xlu0 %v610, 127
    %v618 = vpop.permute.xlu0 %617
    %v619 = vsel %vm579, %v612, %v614
    %v620 = vsel %vm579, %v616, %v618
    %v623 = vsel %vm566, %v619, 0.0
    %v624 = vsel %vm566, %v620, 0.0
    %v625 = vsub.f32 %v500, %v623
    %v626 = vsub.f32 %v507, %v624
    %v627 = vsel %vm536, %v625, %v588
    %v628 = vsel %vm537, %v626, %v589
    %v629 = vsel %vm552, %v625, %v590
    %v630 = vsel %vm553, %v626, %v591
    %v633 = vsub.f32 %v500, %v603
    %v634 = vsub.f32 %v507, %v608
    %v635 = vsel %vm538, %v633, %v627
    %v636 = vsel %vm539, %v634, %v628
    %v637 = vsel %vm554, %v633, %v629
    %v638 = vsel %vm555, %v634, %v630
    %v639 = vld [vmem:[#allocation2 + $0x18] sm:$0xfe]
    %v640 = vld [vmem:[#allocation2 + $0x30] sm:$0xff]
    %v641 = vld [vmem:[#allocation2 + $0x48] sm:$0x1]
    %vm642 = vcmp.ge.s32.totalorder %v118, 1
    %v646 = vrot.slane %v639, 1
    %v647 = vrot.slane %v640, 1
    %v648 = vsel %vm600, %v646, %v647
    %v649 = vrot.slane %v641, 1
    %v650 = vsel %vm600, %v647, %v649
    %651 = vrot.lane.b32.xlu0 %v648, 1
    %v652 = vpop.permute.xlu0 %651
    %653 = vrot.lane.b32.xlu0 %v603, 1
    %v654 = vpop.permute.xlu0 %653
    %655 = vrot.lane.b32.xlu0 %v650, 1
    %v656 = vpop.permute.xlu0 %655
    %657 = vrot.lane.b32.xlu0 %v608, 1
    %v658 = vpop.permute.xlu0 %657
    %v659 = vsel %vm102, %v652, %v654
    %v660 = vsel %vm102, %v656, %v658
    %v663 = vsel %vm642, %v659, 0.0
    %v664 = vsel %vm642, %v660, 0.0
    %v665 = vsub.f32 %v500, %v663
    %v666 = vsub.f32 %v507, %v664
    %v667 = vsel %vm544, %v665, %v635
    %v668 = vsel %vm545, %v666, %v636
    %v669 = vsel %vm558, %v665, %v637
    %v670 = vsel %vm559, %v666, %v638
    %v671 = vld [vmem:[#allocation2 + $0x18] sm:$0xff]
    %673 = vrot.lane.b32.xlu0 %v671, 1
    %v674 = vpop.permute.xlu0 %673
    %675 = vrot.lane.b32.xlu0 %v562, 1
    %v676 = vpop.permute.xlu0 %675
    %677 = vrot.lane.b32.xlu0 %v640, 1
    %v678 = vpop.permute.xlu0 %677
    %679 = vrot.lane.b32.xlu0 %v564, 1
    %v680 = vpop.permute.xlu0 %679
    %v681 = vsel %vm102, %v674, %v676
    %v682 = vsel %vm102, %v678, %v680
    %v685 = vsel %vm642, %v681, 0.0
    %v686 = vsel %vm642, %v682, 0.0
    %v687 = vsub.f32 %v500, %v685
    %v688 = vsub.f32 %v507, %v686
    %v689 = vsel %vm546, %v687, %v667
    %v690 = vsel %vm547, %v688, %v668
    %v691 = vsel %vm532, %v687, %v669
    %v692 = vsel %vm533, %v688, %v670
    %v693 = vld [vmem:[#allocation2] sm:$0x80]
    %v694 = vld [vmem:[#allocation2 + $0x8] sm:$0x80]
    %v695 = vld [vmem:[#allocation2 + $0x30] sm:$0x7f]
    %v696 = vld [vmem:[#allocation2 + $0x38] sm:$0x7f]
    %vm701 = vcmask 1040384
    %v702 = vrot.slane %v693, 7
    %v703 = vrot.slane %v671, 7
    %v704 = vsel %vm701, %v702, %v703
    %v705 = vrot.slane %v694, 7
    %v706 = vrot.slane %v562, 7
    %v707 = vsel %vm701, %v705, %v706
    %v708 = vrot.slane %v695, 7
    %v709 = vsel %vm701, %v703, %v708
    %v710 = vrot.slane %v696, 7
    %v711 = vsel %vm701, %v706, %v710
    %712 = vrot.lane.b32.xlu0 %v704, 1
    %v713 = vpop.permute.xlu0 %712
    %714 = vrot.lane.b32.xlu0 %v707, 1
    %v715 = vpop.permute.xlu0 %714
    %716 = vrot.lane.b32.xlu0 %v709, 1
    %v717 = vpop.permute.xlu0 %716
    %718 = vrot.lane.b32.xlu0 %v711, 1
    %v719 = vpop.permute.xlu0 %718
    %v720 = vsel %vm102, %v713, %v715
    %v721 = vsel %vm102, %v717, %v719
    %v724 = vsel %vm642, %v720, 0.0
    %v725 = vsel %vm642, %v721, 0.0
    %v726 = vsub.f32 %v500, %v724
    %v727 = vsub.f32 %v507, %v725
    %v728 = vsel %vm552, %v726, %v689
    %v729 = vsel %vm553, %v727, %v690
    %v730 = vsel %vm536, %v726, %v691
    %v731 = vsel %vm537, %v727, %v692
    %v734 = vsub.f32 %v500, %v707
    %v735 = vsub.f32 %v507, %v711
    %v736 = vsel %vm554, %v734, %v728
    %v737 = vsel %vm555, %v735, %v729
    %v738 = vsel %vm538, %v734, %v730
    %v739 = vsel %vm539, %v735, %v731
    %v740 = vld [vmem:[#allocation2 + $0x10] sm:$0x80]
    %v741 = vld [vmem:[#allocation2 + $0x40] sm:$0x7f]
    %v744 = vrot.slane %v740, 7
    %v745 = vrot.slane %v563, 7
    %v746 = vsel %vm701, %v744, %v745
    %v747 = vrot.slane %v741, 7
    %v748 = vsel %vm701, %v745, %v747
    %749 = vrot.lane.b32.xlu0 %v707, 127
    %v750 = vpop.permute.xlu0 %749
    %751 = vrot.lane.b32.xlu0 %v746, 127
    %v752 = vpop.permute.xlu0 %751
    %753 = vrot.lane.b32.xlu0 %v711, 127
    %v754 = vpop.permute.xlu0 %753
    %755 = vrot.lane.b32.xlu0 %v748, 127
    %v756 = vpop.permute.xlu0 %755
    %v757 = vsel %vm579, %v750, %v752
    %v758 = vsel %vm579, %v754, %v756
    %v761 = vsel %vm566, %v757, 0.0
    %v762 = vsel %vm566, %v758, 0.0
    %v763 = vsub.f32 %v500, %v761
    %v764 = vsub.f32 %v507, %v762
    %v765 = vsel %vm558, %v763, %v736
    %v766 = vsel %vm559, %v764, %v737
    %v767 = vsel %vm544, %v763, %v738
    %v768 = vsel %vm545, %v764, %v739
    %v769 = vmin.f32 %v765, %v767
    %v770 = vmin.f32 %v766, %v768
    %vm771 = vcmp.gt.f32.partialorder %v769, 0.0
    %vm772 = vcmp.gt.f32.partialorder %v770, 0.0
    %v773 = vsel %vm771, %v500, 0.0
    %v774 = vsel %vm772, %v507, 0.0
    %775 = vst [vmem:[#allocation12] sm:$0xff] %v773
    %776 = vst [vmem:[#allocation12 + $0x8] sm:$0xff] %v774
    %777 = vst [vmem:[#allocation2 + $0x20] sm:$0xff] %v773
    %778 = vst [vmem:[#allocation2 + $0x38] sm:$0xff] %v774
    %v779 = vld [vmem:[#allocation2 + $0x8] sm:$0x80]
    %v780 = vld [vmem:[#allocation2 + $0x20] sm:$0xff]
    %v781 = vld [vmem:[#allocation2 + $0x38] sm:$0x7f]
    %v785 = vrot.slane %v779, 7
    %v786 = vrot.slane %v780, 7
    %v787 = vsel %vm701, %v785, %v786
    %v788 = vrot.slane %v781, 7
    %v789 = vsel %vm701, %v786, %v788
    %v792 = vmax.f32 %v773, %v787
    %v793 = vmax.f32 %v774, %v789
    %v794 = vld [vmem:[#allocation2 + $0x20] sm:$0xfe]
    %v795 = vld [vmem:[#allocation2 + $0x38] sm:$0xff]
    %v796 = vld [vmem:[#allocation2 + $0x50] sm:$0x1]
    %v800 = vrot.slane %v794, 1
    %v801 = vrot.slane %v795, 1
    %v802 = vsel %vm600, %v800, %v801
    %v803 = vrot.slane %v796, 1
    %v804 = vsel %vm600, %v801, %v803
    %v807 = vmax.f32 %v792, %v802
    %v808 = vmax.f32 %v793, %v804
    %809 = vst [vmem:[#allocation2 + $0x20] sm:$0xff] %v807
    %810 = vst [vmem:[#allocation2 + $0x38] sm:$0xff] %v808
    %v811 = vld [vmem:[#allocation2 + $0x18] sm:$0xff]
    %v812 = vld [vmem:[#allocation2 + $0x20] sm:$0xff]
    %v813 = vld [vmem:[#allocation2 + $0x30] sm:$0xff]
    %v814 = vld [vmem:[#allocation2 + $0x38] sm:$0xff]
    %819 = vrot.lane.b32.xlu0 %v811, 1
    %v820 = vpop.permute.xlu0 %819
    %821 = vrot.lane.b32.xlu0 %v812, 1
    %v822 = vpop.permute.xlu0 %821
    %823 = vrot.lane.b32.xlu0 %v813, 1
    %v824 = vpop.permute.xlu0 %823
    %825 = vrot.lane.b32.xlu0 %v814, 1
    %v826 = vpop.permute.xlu0 %825
    %v827 = vsel %vm102, %v820, %v822
    %v828 = vsel %vm102, %v824, %v826
    %v831 = vsel %vm642, %v827, 0.0
    %v832 = vsel %vm642, %v828, 0.0
    %v833 = vmax.f32 %v807, %v831
    %v834 = vmax.f32 %v808, %v832
    %v835 = vld [vmem:[#allocation2 + $0x28] sm:$0xff]
    %v836 = vld [vmem:[#allocation2 + $0x40] sm:$0xff]
    %839 = vrot.lane.b32.xlu0 %v812, 127
    %v840 = vpop.permute.xlu0 %839
    %841 = vrot.lane.b32.xlu0 %v835, 127
    %v842 = vpop.permute.xlu0 %841
    %843 = vrot.lane.b32.xlu0 %v814, 127
    %v844 = vpop.permute.xlu0 %843
    %845 = vrot.lane.b32.xlu0 %v836, 127
    %v846 = vpop.permute.xlu0 %845
    %v847 = vsel %vm579, %v840, %v842
    %v848 = vsel %vm579, %v844, %v846
    %v851 = vsel %vm566, %v847, 0.0
    %v852 = vsel %vm566, %v848, 0.0
    %v853 = vmax.f32 %v833, %v851
    %v854 = vmax.f32 %v834, %v852
    %s855 = scalar_lea.vmem [#allocation12], 16
    %856 = vst [vmem:[%s855] sm:$0xff] %v853
    %857 = vst [vmem:[%s855 + $0x8] sm:$0xff] %v854
    %858 = vst [vmem:[#allocation2 + $0x20] sm:$0xff] %v853
    %859 = vst [vmem:[#allocation2 + $0x38] sm:$0xff] %v854
    %v860 = vld [vmem:[#allocation2 + $0x8] sm:$0x80]
    %v861 = vld [vmem:[#allocation2 + $0x20] sm:$0xff]
    %v862 = vld [vmem:[#allocation2 + $0x38] sm:$0x7f]
    %v866 = vrot.slane %v860, 7
    %v867 = vrot.slane %v861, 7
    %v868 = vsel %vm701, %v866, %v867
    %v869 = vrot.slane %v862, 7
    %v870 = vsel %vm701, %v867, %v869
    %v873 = vmax.f32 %v853, %v868
    %v874 = vmax.f32 %v854, %v870
    %v875 = vld [vmem:[#allocation2 + $0x20] sm:$0xfe]
    %v876 = vld [vmem:[#allocation2 + $0x38] sm:$0xff]
    %v877 = vld [vmem:[#allocation2 + $0x50] sm:$0x1]
    %v881 = vrot.slane %v875, 1
    %v882 = vrot.slane %v876, 1
    %v883 = vsel %vm600, %v881, %v882
    %v884 = vrot.slane %v877, 1
    %v885 = vsel %vm600, %v882, %v884
    %v888 = vmax.f32 %v873, %v883
    %v889 = vmax.f32 %v874, %v885
    %890 = vst [vmem:[#allocation2 + $0x20] sm:$0xff] %v888
    %891 = vst [vmem:[#allocation2 + $0x38] sm:$0xff] %v889
    %v892 = vld [vmem:[#allocation2 + $0x18] sm:$0xff]
    %v893 = vld [vmem:[#allocation2 + $0x20] sm:$0xff]
    %v894 = vld [vmem:[#allocation2 + $0x30] sm:$0xff]
    %v895 = vld [vmem:[#allocation2 + $0x38] sm:$0xff]
    %900 = vrot.lane.b32.xlu0 %v892, 1
    %v901 = vpop.permute.xlu0 %900
    %902 = vrot.lane.b32.xlu0 %v893, 1
    %v903 = vpop.permute.xlu0 %902
    %904 = vrot.lane.b32.xlu0 %v894, 1
    %v905 = vpop.permute.xlu0 %904
    %906 = vrot.lane.b32.xlu0 %v895, 1
    %v907 = vpop.permute.xlu0 %906
    %v908 = vsel %vm102, %v901, %v903
    %v909 = vsel %vm102, %v905, %v907
    %v912 = vsel %vm642, %v908, 0.0
    %v913 = vsel %vm642, %v909, 0.0
    %v914 = vmax.f32 %v888, %v912
    %v915 = vmax.f32 %v889, %v913
    %v916 = vld [vmem:[#allocation2 + $0x28] sm:$0xff]
    %v917 = vld [vmem:[#allocation2 + $0x40] sm:$0xff]
    %920 = vrot.lane.b32.xlu0 %v893, 127
    %v921 = vpop.permute.xlu0 %920
    %922 = vrot.lane.b32.xlu0 %v916, 127
    %v923 = vpop.permute.xlu0 %922
    %924 = vrot.lane.b32.xlu0 %v895, 127
    %v925 = vpop.permute.xlu0 %924
    %926 = vrot.lane.b32.xlu0 %v917, 127
    %v927 = vpop.permute.xlu0 %926
    %v928 = vsel %vm579, %v921, %v923
    %v929 = vsel %vm579, %v925, %v927
    %v932 = vsel %vm566, %v928, 0.0
    %v933 = vsel %vm566, %v929, 0.0
    %v934 = vmax.f32 %v914, %v932
    %v935 = vmax.f32 %v915, %v933
    %s936 = scalar_lea.vmem [#allocation12], 32
    %937 = vst [vmem:[%s936] sm:$0xff] %v934
    %938 = vst [vmem:[%s936 + $0x8] sm:$0xff] %v935
    %939 = vst [vmem:[#allocation2 + $0x20] sm:$0xff] %v934
    %940 = vst [vmem:[#allocation2 + $0x38] sm:$0xff] %v935
    %v941 = vld [vmem:[#allocation2 + $0x8] sm:$0x80]
    %v942 = vld [vmem:[#allocation2 + $0x20] sm:$0xff]
    %v943 = vld [vmem:[#allocation2 + $0x38] sm:$0x7f]
    %v947 = vrot.slane %v941, 7
    %v948 = vrot.slane %v942, 7
    %v949 = vsel %vm701, %v947, %v948
    %v950 = vrot.slane %v943, 7
    %v951 = vsel %vm701, %v948, %v950
    %v954 = vmax.f32 %v934, %v949
    %v955 = vmax.f32 %v935, %v951
    %v956 = vld [vmem:[#allocation2 + $0x20] sm:$0xfe]
    %v957 = vld [vmem:[#allocation2 + $0x38] sm:$0xff]
    %v958 = vld [vmem:[#allocation2 + $0x50] sm:$0x1]
    %v962 = vrot.slane %v956, 1
    %v963 = vrot.slane %v957, 1
    %v964 = vsel %vm600, %v962, %v963
    %v965 = vrot.slane %v958, 1
    %v966 = vsel %vm600, %v963, %v965
    %v969 = vmax.f32 %v954, %v964
    %v970 = vmax.f32 %v955, %v966
    %971 = vst [vmem:[#allocation2 + $0x20] sm:$0xff] %v969
    %972 = vst [vmem:[#allocation2 + $0x38] sm:$0xff] %v970
    %v973 = vld [vmem:[#allocation2 + $0x18] sm:$0xff]
    %v974 = vld [vmem:[#allocation2 + $0x20] sm:$0xff]
    %v975 = vld [vmem:[#allocation2 + $0x30] sm:$0xff]
    %v976 = vld [vmem:[#allocation2 + $0x38] sm:$0xff]
    %981 = vrot.lane.b32.xlu0 %v973, 1
    %v982 = vpop.permute.xlu0 %981
    %983 = vrot.lane.b32.xlu0 %v974, 1
    %v984 = vpop.permute.xlu0 %983
    %985 = vrot.lane.b32.xlu0 %v975, 1
    %v986 = vpop.permute.xlu0 %985
    %987 = vrot.lane.b32.xlu0 %v976, 1
    %v988 = vpop.permute.xlu0 %987
    %v989 = vsel %vm102, %v982, %v984
    %v990 = vsel %vm102, %v986, %v988
    %v993 = vsel %vm642, %v989, 0.0
    %v994 = vsel %vm642, %v990, 0.0
    %v995 = vmax.f32 %v969, %v993
    %v996 = vmax.f32 %v970, %v994
    %v997 = vld [vmem:[#allocation2 + $0x28] sm:$0xff]
    %v998 = vld [vmem:[#allocation2 + $0x40] sm:$0xff]
    %1001 = vrot.lane.b32.xlu0 %v974, 127
    %v1002 = vpop.permute.xlu0 %1001
    %1003 = vrot.lane.b32.xlu0 %v997, 127
    %v1004 = vpop.permute.xlu0 %1003
    %1005 = vrot.lane.b32.xlu0 %v976, 127
    %v1006 = vpop.permute.xlu0 %1005
    %1007 = vrot.lane.b32.xlu0 %v998, 127
    %v1008 = vpop.permute.xlu0 %1007
    %v1009 = vsel %vm579, %v1002, %v1004
    %v1010 = vsel %vm579, %v1006, %v1008
    %v1013 = vsel %vm566, %v1009, 0.0
    %v1014 = vsel %vm566, %v1010, 0.0
    %v1015 = vmax.f32 %v995, %v1013
    %v1016 = vmax.f32 %v996, %v1014
    %s1017 = scalar_lea.vmem [#allocation12], 48
    %1018 = vst [vmem:[%s1017] sm:$0xff] %v1015
    %1019 = vst [vmem:[%s1017 + $0x8] sm:$0xff] %v1016
    %1020 = vst [vmem:[#allocation2 + $0x20] sm:$0xff] %v1015
    %1021 = vst [vmem:[#allocation2 + $0x38] sm:$0xff] %v1016
    %v1022 = vld [vmem:[#allocation2 + $0x8] sm:$0x80]
    %v1023 = vld [vmem:[#allocation2 + $0x20] sm:$0xff]
    %v1024 = vld [vmem:[#allocation2 + $0x38] sm:$0x7f]
    %v1028 = vrot.slane %v1022, 7
    %v1029 = vrot.slane %v1023, 7
    %v1030 = vsel %vm701, %v1028, %v1029
    %v1031 = vrot.slane %v1024, 7
    %v1032 = vsel %vm701, %v1029, %v1031
    %v1035 = vmax.f32 %v1015, %v1030
    %v1036 = vmax.f32 %v1016, %v1032
    %v1037 = vld [vmem:[#allocation2 + $0x20] sm:$0xfe]
    %v1038 = vld [vmem:[#allocation2 + $0x38] sm:$0xff]
    %v1039 = vld [vmem:[#allocation2 + $0x50] sm:$0x1]
    %v1043 = vrot.slane %v1037, 1
    %v1044 = vrot.slane %v1038, 1
    %v1045 = vsel %vm600, %v1043, %v1044
    %v1046 = vrot.slane %v1039, 1
    %v1047 = vsel %vm600, %v1044, %v1046
    %v1050 = vmax.f32 %v1035, %v1045
    %v1051 = vmax.f32 %v1036, %v1047
    %1052 = vst [vmem:[#allocation2 + $0x20] sm:$0xff] %v1050
    %1053 = vst [vmem:[#allocation2 + $0x38] sm:$0xff] %v1051
    %v1054 = vld [vmem:[#allocation2 + $0x18] sm:$0xff]
    %v1055 = vld [vmem:[#allocation2 + $0x20] sm:$0xff]
    %v1056 = vld [vmem:[#allocation2 + $0x30] sm:$0xff]
    %v1057 = vld [vmem:[#allocation2 + $0x38] sm:$0xff]
    %1062 = vrot.lane.b32.xlu0 %v1054, 1
    %v1063 = vpop.permute.xlu0 %1062
    %1064 = vrot.lane.b32.xlu0 %v1055, 1
    %v1065 = vpop.permute.xlu0 %1064
    %1066 = vrot.lane.b32.xlu0 %v1056, 1
    %v1067 = vpop.permute.xlu0 %1066
    %1068 = vrot.lane.b32.xlu0 %v1057, 1
    %v1069 = vpop.permute.xlu0 %1068
    %v1070 = vsel %vm102, %v1063, %v1065
    %v1071 = vsel %vm102, %v1067, %v1069
    %v1074 = vsel %vm642, %v1070, 0.0
    %v1075 = vsel %vm642, %v1071, 0.0
    %v1076 = vmax.f32 %v1050, %v1074
    %v1077 = vmax.f32 %v1051, %v1075
    %v1078 = vld [vmem:[#allocation2 + $0x28] sm:$0xff]
    %v1079 = vld [vmem:[#allocation2 + $0x40] sm:$0xff]
    %1082 = vrot.lane.b32.xlu0 %v1055, 127
    %v1083 = vpop.permute.xlu0 %1082
    %1084 = vrot.lane.b32.xlu0 %v1078, 127
    %v1085 = vpop.permute.xlu0 %1084
    %1086 = vrot.lane.b32.xlu0 %v1057, 127
    %v1087 = vpop.permute.xlu0 %1086
    %1088 = vrot.lane.b32.xlu0 %v1079, 127
    %v1089 = vpop.permute.xlu0 %1088
    %v1090 = vsel %vm579, %v1083, %v1085
    %v1091 = vsel %vm579, %v1087, %v1089
    %v1094 = vsel %vm566, %v1090, 0.0
    %v1095 = vsel %vm566, %v1091, 0.0
    %v1096 = vmax.f32 %v1076, %v1094
    %v1097 = vmax.f32 %v1077, %v1095
    %s1098 = scalar_lea.vmem [#allocation12], 64
    %1099 = vst [vmem:[%s1098] sm:$0xff] %v1096
    %1100 = vst [vmem:[%s1098 + $0x8] sm:$0xff] %v1097
    // Predicated region
    $region42: #{tpu_custom_call.1} parent=1 // pred_check
      _
    $region43: #{tpu_custom_call.1} parent=1 // pred_check_branch
      %1102 = sbr.rel (0) target = $region45
    $region44: #{tpu_custom_call.1} parent=1 // pred_region
      %s1104 = ssub.s32 1280, 1280
      %1105 = vsyncadd [#allocation5], %s1104
      %s1106 = sshll.u32 [#allocation12], 4
      %s1107 = int_to_ptr.vmem [resolvable:$true] %s1106
      %1112 = dma.vmem_to_hbm [thread:$0]  %s1107, 1280, %s5, [#allocation5], 128, 128, 8
    $region45: #{tpu_custom_call.1} parent=1 // pred_fallthru
      _
    // Predicated region
    $region46: #{tpu_custom_call.1} parent=1 // pred_check
      _
    $region47: #{tpu_custom_call.1} parent=1 // pred_check_branch
      %1114 = sbr.rel (0) target = $region49
    $region48: #{tpu_custom_call.1} parent=1 // pred_region
      %1115 = dma.done [#allocation5], 1280
    $region49: #{tpu_custom_call.1} parent=1 // pred_fallthru
      _
    %1116 = vsyncpa [#allocation4], 1
    %1117 = vsyncpa [#allocation7], 1
    %1118 = vsyncpa [#allocation10], 1
    %1119 = vsyncpa [#allocation5], 1

</llo_original>
